<compile_context>
chip_gen: v7x
topology: tpu7x:2x2x1
jax: 0.10.0
libtpu: 0.0.40
codegen_flags: <defaults>
</compile_context>

<pallas_src>
import functools

import jax
import jax.numpy as jnp
import numpy as np
from jax.experimental import pallas as pl
from jax.experimental.pallas import tpu as pltpu

_LOG_EPS = float(np.log(1e-10))   # floor matching the reference's +1e-10 term


def _ray_march_kernel(minmax_ref, tri_ref, colors_ref, dens_ref, depths_ref,
                      *rest, is_sdf, is_normal, white_back, slab, C):
    if is_normal:
        grads_ref, comp_ref, w_ref = rest
    else:
        comp_ref, w_ref = rest

    dmin = minmax_ref[0]
    dmax = minmax_ref[1]
    tri = tri_ref[...]                          # (S, S-1), VMEM-resident

    tile_rays = dens_ref.shape[1]
    n_slabs = tile_rays // slab                 # kept small (<= 4) on purpose

    # Static slab loop over lane-aligned 128*k windows inside the DMA tile.
    # Per-slab intermediates are consumed immediately (per-channel loops), so
    # vreg pressure stays well under 64 even at slab=512.
    for j in range(n_slabs):
        sl = pl.ds(j * slab, slab)

        depths = depths_ref[:, sl].astype(jnp.float32)   # (S, slab)
        dens = dens_ref[:, sl].astype(jnp.float32)       # (S, slab)

        deltas = depths[1:, :] - depths[:-1, :]                  # (S-1, slab)
        depths_mid = (depths[:-1, :] + depths[1:, :]) * 0.5      # (S-1, slab)
        dens_mid = (dens[:-1, :] + dens[1:, :]) * 0.5            # (S-1, slab)

        if not is_sdf:
            x = dens_mid - 1.0
            # numerically-stable softplus: max(x,0) + log(1 + exp(-|x|))
            dens_mid = jnp.maximum(x, 0.0) + jnp.log(1.0 + jnp.exp(-jnp.abs(x)))

        density_delta = dens_mid * deltas                        # (S-1, slab)

        # log(exp(-dd) + 1e-10) ~= max(-dd, log(1e-10)); deliberate
        # approximation, diverges only where transmittance ~1e-10 (weights
        # negligible).  Inclusive cumsum with a leading zero row via one MXU
        # matmul, one exp -> T_0..T_{S-1}; weights_i = T_i - T_{i+1}.
        log_t = jnp.maximum(-density_delta, jnp.float32(_LOG_EPS))
        cum = jnp.dot(tri, log_t, preferred_element_type=jnp.float32)  # (S, slab)
        t = jnp.exp(cum)                                               # (S, slab)
        weights = t[:-1, :] - t[1:, :]                                 # (S-1, slab)
        w_ref[:, sl] = weights.astype(w_ref.dtype)

        wt = jnp.sum(weights, axis=0, keepdims=True)             # (1, slab)
        one_minus_wt = 1.0 - wt

        rows = []
        for c in range(C):
            col = colors_ref[c, :, sl].astype(jnp.float32)       # (S, slab)
            cmid = (col[:-1, :] + col[1:, :]) * 0.5
            r = jnp.sum(weights * cmid, axis=0, keepdims=True)   # (1, slab)
            if white_back and c < 3:
                r = r + one_minus_wt
            rows.append(r * 2.0 - 1.0)

        d = jnp.sum(weights * depths_mid, axis=0, keepdims=True) / wt
        d = jnp.where(jnp.isnan(d), jnp.float32(jnp.inf), d)     # nan_to_num(inf)
        d = jnp.clip(d, dmin, dmax)                              # (1, slab)
        rows.append(d)

        if is_normal:
            for c in range(3):
                g = grads_ref[c, :, sl].astype(jnp.float32)      # (S, slab)
                gmid = (g[:-1, :] + g[1:, :]) * 0.5
                rows.append(jnp.sum(weights * gmid, axis=0, keepdims=True)
                            + one_minus_wt)

        # single packed, lane-dense store per slab: [0:C]=rgb, [C]=depth,
        # [C+1:C+4]=grad
        comp_ref[:, sl] = jnp.concatenate(rows, axis=0).astype(comp_ref.dtype)


def _round_up(x, m):
    return (x + m - 1) // m * m


def _select_tile(r_pad, ray_tile, min_grid=8):
    """Lane tile TR: multiple of 128, divides r_pad, and keeps the grid long
    enough (>= min_grid steps) for v7x megacore + double-buffer overlap."""
    target = min(_round_up(ray_tile, 128), r_pad)
    if r_pad >= min_grid * 128:
        target = min(target, max(128, (r_pad // min_grid) // 128 * 128))
    tr = max(128, (target // 128) * 128)
    while r_pad % tr != 0:
        tr -= 128
    return tr


def mip_ray_marcher2_lanes(colors_t, densities_t, depths_t, grads_t,
                           rendering_options, minmax, *,
                           ray_tile=2048, lane_slab=512):
    """Core lane-dense entry point.

    colors_t: (C, S, R) f32/bf16, densities_t/depths_t: (S, R) f32,
    grads_t: (3, S, R) or None, minmax: (2,) f32 [min(depths), max(depths)].
    R must be a multiple of 128.  Returns (comp, weights) where comp is the
    packed (C+1[+3], R) rgb/depth/grad slab and weights is (S-1, R).
    """
    is_sdf = bool(rendering_options.get('is_sdf', False))
    is_normal = bool(rendering_options.get('is_normal', False))
    white_back = bool(rendering_options.get('white_back', False))

    C, S, R = colors_t.shape
    assert R % 128 == 0, "pad the ray axis to a multiple of 128 upstream"
    sm1 = S - 1

    TR = _select_tile(R, ray_tile)
    lane_slab = max(128, _round_up(lane_slab, 128))
    slab = min(lane_slab, TR)
    while TR % slab != 0:
        slab -= 128

    # (S, S-1) lower-triangular matrix with a leading zero row; tri @ log_t is
    # the inclusive cumsum of log-transmittance (T_0 = 1).  Stays resident.
    tri = jnp.asarray(np.tril(np.ones((S, sm1), np.float32), k=-1))

    NCH = C + 1 + (3 if is_normal else 0)
    grid = (R // TR,)

    in_specs = [
        pl.BlockSpec(memory_space=pltpu.MemorySpace.SMEM),      # depth min/max
        pl.BlockSpec((S, sm1), lambda i: (0, 0)),               # tri (resident)
        pl.BlockSpec((C, S, TR), lambda i: (0, 0, i)),          # colors
        pl.BlockSpec((S, TR), lambda i: (0, i)),                # densities
        pl.BlockSpec((S, TR), lambda i: (0, i)),                # depths
    ]
    args = [minmax, tri, colors_t, densities_t, depths_t]
    if is_normal:
        in_specs.append(pl.BlockSpec((3, S, TR), lambda i: (0, 0, i)))
        args.append(grads_t)

    out_shape = (
        jax.ShapeDtypeStruct((NCH, R), jnp.float32),            # packed outputs
        jax.ShapeDtypeStruct((sm1, R), jnp.float32),            # weights
    )
    out_specs = (
        pl.BlockSpec((NCH, TR), lambda i: (0, i)),
        pl.BlockSpec((sm1, TR), lambda i: (0, i)),
    )

    bytes_accessed = int(
        colors_t.size * colors_t.dtype.itemsize
        + densities_t.size * densities_t.dtype.itemsize
        + depths_t.size * depths_t.dtype.itemsize
        + (grads_t.size * grads_t.dtype.itemsize if is_normal else 0)
        + (NCH + sm1) * R * 4)
    cost = pl.CostEstimate(
        flops=int(R * sm1 * (10 + 4 * C + (12 if is_normal else 0))),
        transcendentals=int(R * sm1 * 3),
        bytes_accessed=bytes_accessed)

    kernel = functools.partial(_ray_march_kernel, is_sdf=is_sdf,
                               is_normal=is_normal, white_back=white_back,
                               slab=slab, C=C)

    comp, weights = pl.pallas_call(
        kernel,
        out_shape=out_shape,
        grid=grid,
        in_specs=in_specs,
        out_specs=out_specs,
        compiler_params=pltpu.CompilerParams(
            dimension_semantics=("parallel",)),
        cost_estimate=cost,
    )(*args)
    return comp, weights


def mip_ray_marcher2(colors, densities, depths, grads, rendering_options, *,
                     ray_tile=2048, lane_slab=512, low_precision_io=False):
    """Compat wrapper matching MipRayMarcher2.forward.

    colors: (B, N, S, C), densities/depths: (B, N, S, 1), grads: (B, N, S, 3)
    (grads only read when is_normal).  Set low_precision_io=True to stream the
    dominant colors/grads inputs as bf16 (halves HBM traffic; loosens accuracy).
    """
    is_normal = bool(rendering_options.get('is_normal', False))
    B, N, S, C = colors.shape
    R = B * N
    sm1 = S - 1

    # pad rays only to a multiple of 128 (waste capped at one lane block); TR
    # is then chosen as a divisor of R_pad inside the lanes entry point.
    R_pad = _round_up(R, 128)
    pad = R_pad - R
    io_dtype = jnp.bfloat16 if low_precision_io else None

    # TODO(synk): for peak end-to-end performance, produce/consume these
    # lane-dense (K, S, R) arrays directly upstream/downstream (or fuse the
    # transposes into the pallas_call via CompilerParams(allow_input_fusion))
    # and call mip_ray_marcher2_lanes; this wrapper keeps the (B, N, S, K)
    # interface and pays one transpose pass per tensor.
    def _prep2(x):    # (B,N,S,1) -> (S, R_pad)
        xt = jnp.transpose(x.reshape(R, S), (1, 0))
        return jnp.pad(xt, ((0, 0), (0, pad))) if pad else xt

    def _prep3(x, k):  # (B,N,S,k) -> (k, S, R_pad)
        xt = jnp.transpose(x.reshape(R, S, k), (2, 1, 0))
        if io_dtype is not None:
            xt = xt.astype(io_dtype)
        return jnp.pad(xt, ((0, 0), (0, 0), (0, pad))) if pad else xt

    # min/max for the depth clamp taken from the already-transposed (unpadded)
    # depths so no separate HBM pass over the original layout is needed.
    depths_rt = jnp.transpose(depths.reshape(R, S), (1, 0))      # (S, R)
    minmax = jnp.stack([jnp.min(depths_rt),
                        jnp.max(depths_rt)]).astype(jnp.float32)
    depths_t = jnp.pad(depths_rt, ((0, 0), (0, pad))) if pad else depths_rt

    dens_t = _prep2(densities)
    colors_t = _prep3(colors, C)
    grads_t = _prep3(grads, 3) if is_normal else None

    comp, weights = mip_ray_marcher2_lanes(
        colors_t, dens_t, depths_t, grads_t, rendering_options, minmax,
        ray_tile=ray_tile, lane_slab=lane_slab)

    comp = comp[:, :R]
    weights = weights[:, :R]

    composite_rgb = jnp.transpose(comp[:C], (1, 0)).reshape(B, N, C)
    composite_depth = jnp.transpose(comp[C:C + 1], (1, 0)).reshape(B, N, 1)
    weights_out = jnp.transpose(weights, (1, 0)).reshape(B, N, sm1, 1)
    composite_grad = (jnp.transpose(comp[C + 1:C + 4], (1, 0)).reshape(B, N, 3)
                      if is_normal else None)
    return composite_rgb, composite_depth, weights_out, composite_grad


def _reference(colors, densities, depths, grads, rendering_options):
    """Pure-JAX reference mirroring the PyTorch code."""
    deltas = depths[:, :, 1:] - depths[:, :, :-1]
    colors_mid = (colors[:, :, :-1] + colors[:, :, 1:]) / 2
    densities_mid = (densities[:, :, :-1] + densities[:, :, 1:]) / 2
    depths_mid = (depths[:, :, :-1] + depths[:, :, 1:]) / 2
    if rendering_options['is_normal']:
        grads_mid = (grads[:, :, :-1] + grads[:, :, 1:]) / 2
    if not rendering_options['is_sdf']:
        densities_mid = jax.nn.softplus(densities_mid - 1)
    density_delta = densities_mid * deltas
    alpha = 1 - jnp.exp(-density_delta)
    alpha_shifted = jnp.concatenate(
        [jnp.ones_like(alpha[:, :, :1]), 1 - alpha + 1e-10], -2)
    weights = alpha * jnp.cumprod(alpha_shifted, -2)[:, :, :-1]
    composite_rgb = jnp.sum(weights * colors_mid, -2)
    weight_total = weights.sum(2)
    composite_depth = jnp.sum(weights * depths_mid, -2) / weight_total
    composite_depth = jnp.where(jnp.isnan(composite_depth), jnp.inf,
                                composite_depth)
    composite_depth = jnp.clip(composite_depth, jnp.min(depths),
                               jnp.max(depths))
    if rendering_options['is_normal']:
        composite_grad = jnp.sum(weights * grads_mid, -2) + 1 - weight_total
    else:
        composite_grad = None
    if rendering_options.get('white_back', False):
        composite_rgb = composite_rgb.at[..., :3].add(1 - weight_total)
    composite_rgb = composite_rgb * 2 - 1
    return composite_rgb, composite_depth, weights, composite_grad


if __name__ == "__main__":
    key = jax.random.PRNGKey(0)
    B, N, S, C = 2, 1024, 17, 3
    k1, k2, k3, k4 = jax.random.split(key, 4)

    colors = jax.random.uniform(k1, (B, N, S, C), dtype=jnp.float32)
    densities = jax.random.normal(k2, (B, N, S, 1), dtype=jnp.float32)
    depths_base = jnp.linspace(2.0, 3.5, S, dtype=jnp.float32)
    depths = (depths_base[None, None, :, None]
              + 0.01 * jax.random.uniform(k3, (B, N, S, 1), dtype=jnp.float32))
    grads = jax.random.normal(k4, (B, N, S, 3), dtype=jnp.float32)

    # variant 1: normals + white background
    opts = {'is_normal': True, 'is_sdf': False, 'white_back': True}
    rgb, depth, weights, grad = mip_ray_marcher2(
        colors, densities, depths, grads, opts)
    jax.block_until_ready((rgb, depth, weights, grad))

    r_rgb, r_depth, r_w, r_grad = _reference(
        colors, densities, depths, grads, opts)
    np.testing.assert_allclose(np.asarray(rgb), np.asarray(r_rgb),
                               rtol=1e-4, atol=1e-5)
    np.testing.assert_allclose(np.asarray(depth), np.asarray(r_depth),
                               rtol=1e-4, atol=1e-5)
    np.testing.assert_allclose(np.asarray(weights), np.asarray(r_w),
                               rtol=1e-4, atol=1e-5)
    np.testing.assert_allclose(np.asarray(grad), np.asarray(r_grad),
                               rtol=1e-4, atol=1e-5)

    # variant 2: no normals (grads stream skipped entirely), no white back
    opts2 = {'is_normal': False, 'is_sdf': False, 'white_back': False}
    rgb2, depth2, weights2, grad2 = mip_ray_marcher2(
        colors, densities, depths, None, opts2)
    jax.block_until_ready((rgb2, depth2, weights2))
    assert grad2 is None

    r_rgb2, r_depth2, r_w2, r_grad2 = _reference(
        colors, densities, depths, grads, opts2)
    assert r_grad2 is None
    np.testing.assert_allclose(np.asarray(rgb2), np.asarray(r_rgb2),
                               rtol=1e-4, atol=1e-5)
    np.testing.assert_allclose(np.asarray(depth2), np.asarray(r_depth2),
                               rtol=1e-4, atol=1e-5)
    np.testing.assert_allclose(np.asarray(weights2), np.asarray(r_w2),
                               rtol=1e-4, atol=1e-5)

    # variant 3: is_sdf=True (softplus skipped)
    opts3 = {'is_normal': False, 'is_sdf': True, 'white_back': False}
    rgb3, depth3, weights3, grad3 = mip_ray_marcher2(
        colors, densities, depths, None, opts3)
    jax.block_until_ready((rgb3, depth3, weights3))
    assert grad3 is None

    r_rgb3, r_depth3, r_w3, _ = _reference(
        colors, densities, depths, grads, opts3)
    np.testing.assert_allclose(np.asarray(rgb3), np.asarray(r_rgb3),
                               rtol=1e-4, atol=1e-5)
    np.testing.assert_allclose(np.asarray(depth3), np.asarray(r_depth3),
                               rtol=1e-4, atol=1e-5)
    np.testing.assert_allclose(np.asarray(weights3), np.asarray(r_w3),
                               rtol=1e-4, atol=1e-5)

    print("KERNEL_OK")
</pallas_src>

<mosaic_0001>
module attributes {stable_mosaic.version = 11 : i64} {
  func.func @_ray_march_kernel(%arg0: i32, %arg1: memref<2xf32, #tpu.memory_space<smem>>, %arg2: memref<17x16xf32, #tpu.memory_space<vmem>>, %arg3: memref<3x17x256xf32, #tpu.memory_space<vmem>>, %arg4: memref<17x256xf32, #tpu.memory_space<vmem>>, %arg5: memref<17x256xf32, #tpu.memory_space<vmem>>, %arg6: memref<3x17x256xf32, #tpu.memory_space<vmem>>, %arg7: memref<7x256xf32, #tpu.memory_space<vmem>>, %arg8: memref<16x256xf32, #tpu.memory_space<vmem>>) attributes {dimension_semantics = [#tpu.dimension_semantics<parallel>], iteration_bounds = array<i64: 8>, scalar_prefetch = 0 : i64, scratch_operands = 0 : i64, tpu.core_type = #tpu.core_type<tc>, window_params = [{transform_indices = @transform_0, window_bounds = array<i64: 2>}, {pipeline_mode = #tpu.pipeline_mode<synchronous>, transform_indices = @transform_1, window_bounds = array<i64: 17, 16>}, {transform_indices = @transform_2, window_bounds = array<i64: 3, 17, 256>}, {transform_indices = @transform_3, window_bounds = array<i64: 17, 256>}, {transform_indices = @transform_4, window_bounds = array<i64: 17, 256>}, {transform_indices = @transform_5, window_bounds = array<i64: 3, 17, 256>}, {transform_indices = @transform_6, window_bounds = array<i64: 7, 256>}, {transform_indices = @transform_7, window_bounds = array<i64: 16, 256>}]} {
    %c0 = arith.constant 0 : index
    %0 = memref.load %arg1[%c0] : memref<2xf32, #tpu.memory_space<smem>>
    %c1 = arith.constant 1 : index
    %1 = memref.load %arg1[%c1] : memref<2xf32, #tpu.memory_space<smem>>
    %c0_0 = arith.constant 0 : index
    %c0_1 = arith.constant 0 : index
    %2 = vector.load %arg2[%c0_0, %c0_1] : memref<17x16xf32, #tpu.memory_space<vmem>>, vector<17x16xf32>
    %c0_2 = arith.constant 0 : index
    %c0_3 = arith.constant 0 : index
    %3 = vector.load %arg5[%c0_2, %c0_3] : memref<17x256xf32, #tpu.memory_space<vmem>>, vector<17x256xf32>
    %c0_4 = arith.constant 0 : index
    %c0_5 = arith.constant 0 : index
    %4 = vector.load %arg4[%c0_4, %c0_5] : memref<17x256xf32, #tpu.memory_space<vmem>>, vector<17x256xf32>
    %5 = vector.extract_strided_slice %3 {offsets = [1, 0], sizes = [16, 256], strides = [1, 1]} : vector<17x256xf32> to vector<16x256xf32>
    %6 = vector.extract_strided_slice %3 {offsets = [0, 0], sizes = [16, 256], strides = [1, 1]} : vector<17x256xf32> to vector<16x256xf32>
    %7 = arith.subf %5, %6 : vector<16x256xf32>
    %8 = vector.extract_strided_slice %3 {offsets = [0, 0], sizes = [16, 256], strides = [1, 1]} : vector<17x256xf32> to vector<16x256xf32>
    %9 = vector.extract_strided_slice %3 {offsets = [1, 0], sizes = [16, 256], strides = [1, 1]} : vector<17x256xf32> to vector<16x256xf32>
    %10 = arith.addf %8, %9 : vector<16x256xf32>
    %cst = arith.constant 5.000000e-01 : f32
    %11 = vector.broadcast %cst : f32 to vector<16x256xf32>
    %12 = arith.mulf %10, %11 : vector<16x256xf32>
    %13 = vector.extract_strided_slice %4 {offsets = [0, 0], sizes = [16, 256], strides = [1, 1]} : vector<17x256xf32> to vector<16x256xf32>
    %14 = vector.extract_strided_slice %4 {offsets = [1, 0], sizes = [16, 256], strides = [1, 1]} : vector<17x256xf32> to vector<16x256xf32>
    %15 = arith.addf %13, %14 : vector<16x256xf32>
    %cst_6 = arith.constant 5.000000e-01 : f32
    %16 = vector.broadcast %cst_6 : f32 to vector<16x256xf32>
    %17 = arith.mulf %15, %16 : vector<16x256xf32>
    %cst_7 = arith.constant 1.000000e+00 : f32
    %18 = vector.broadcast %cst_7 : f32 to vector<16x256xf32>
    %19 = arith.subf %17, %18 : vector<16x256xf32>
    %cst_8 = arith.constant 0.000000e+00 : f32
    %20 = vector.broadcast %cst_8 : f32 to vector<16x256xf32>
    %21 = arith.maximumf %19, %20 : vector<16x256xf32>
    %22 = math.absf %19 : vector<16x256xf32>
    %cst_9 = arith.constant 0.000000e+00 : f32
    %23 = vector.broadcast %cst_9 : f32 to vector<16x256xf32>
    %24 = arith.subf %23, %22 : vector<16x256xf32>
    %25 = math.exp %24 : vector<16x256xf32>
    %cst_10 = arith.constant 1.000000e+00 : f32
    %26 = vector.broadcast %cst_10 : f32 to vector<16x256xf32>
    %27 = arith.addf %26, %25 : vector<16x256xf32>
    %28 = math.log %27 : vector<16x256xf32>
    %29 = arith.addf %21, %28 : vector<16x256xf32>
    %30 = arith.mulf %29, %7 : vector<16x256xf32>
    %cst_11 = arith.constant 0.000000e+00 : f32
    %31 = vector.broadcast %cst_11 : f32 to vector<16x256xf32>
    %32 = arith.subf %31, %30 : vector<16x256xf32>
    %cst_12 = arith.constant -23.0258503 : f32
    %33 = vector.broadcast %cst_12 : f32 to vector<16x256xf32>
    %34 = arith.maximumf %32, %33 : vector<16x256xf32>
    %cst_13 = arith.constant dense<0.000000e+00> : vector<17x256xf32>
    %35 = tpu.matmul %2, %34, %cst_13 {dimension_numbers = #tpu.dot_dimension_numbers<[1], [0], [0], [1], [0, 0, 1, 1], [], []>} : vector<17x16xf32>, vector<16x256xf32>, vector<17x256xf32> -> vector<17x256xf32>
    %36 = math.exp %35 : vector<17x256xf32>
    %37 = vector.extract_strided_slice %36 {offsets = [0, 0], sizes = [16, 256], strides = [1, 1]} : vector<17x256xf32> to vector<16x256xf32>
    %38 = vector.extract_strided_slice %36 {offsets = [1, 0], sizes = [16, 256], strides = [1, 1]} : vector<17x256xf32> to vector<16x256xf32>
    %39 = arith.subf %37, %38 : vector<16x256xf32>
    %c0_14 = arith.constant 0 : index
    %c0_15 = arith.constant 0 : index
    %40 = vector.load %arg8[%c0_14, %c0_15] : memref<16x256xf32, #tpu.memory_space<vmem>>, vector<16x256xf32>
    tpu.vector_store %arg8[%c0_14, %c0_15], %39 {strides = array<i32>} : memref<16x256xf32, #tpu.memory_space<vmem>>, vector<16x256xf32>,
    %cst_16 = arith.constant dense<0.000000e+00> : vector<256xf32>
    %41 = vector.multi_reduction <add>, %39, %cst_16 [0] : vector<16x256xf32> to vector<256xf32>
    %42 = vector.shape_cast %41 : vector<256xf32> to vector<1x256xf32>
    %cst_17 = arith.constant 1.000000e+00 : f32
    %43 = vector.broadcast %cst_17 : f32 to vector<1x256xf32>
    %44 = arith.subf %43, %42 : vector<1x256xf32>
    %c0_18 = arith.constant 0 : index
    %c0_19 = arith.constant 0 : index
    %c0_20 = arith.constant 0 : index
    %45 = vector.load %arg3[%c0_18, %c0_19, %c0_20] : memref<3x17x256xf32, #tpu.memory_space<vmem>>, vector<1x17x256xf32>
    %46 = vector.shape_cast %45 : vector<1x17x256xf32> to vector<17x256xf32>
    %47 = vector.extract_strided_slice %46 {offsets = [0, 0], sizes = [16, 256], strides = [1, 1]} : vector<17x256xf32> to vector<16x256xf32>
    %48 = vector.extract_strided_slice %46 {offsets = [1, 0], sizes = [16, 256], strides = [1, 1]} : vector<17x256xf32> to vector<16x256xf32>
    %49 = arith.addf %47, %48 : vector<16x256xf32>
    %cst_21 = arith.constant 5.000000e-01 : f32
    %50 = vector.broadcast %cst_21 : f32 to vector<16x256xf32>
    %51 = arith.mulf %49, %50 : vector<16x256xf32>
    %52 = arith.mulf %39, %51 : vector<16x256xf32>
    %cst_22 = arith.constant dense<0.000000e+00> : vector<256xf32>
    %53 = vector.multi_reduction <add>, %52, %cst_22 [0] : vector<16x256xf32> to vector<256xf32>
    %54 = vector.shape_cast %53 : vector<256xf32> to vector<1x256xf32>
    %55 = arith.addf %54, %44 : vector<1x256xf32>
    %cst_23 = arith.constant 2.000000e+00 : f32
    %56 = vector.broadcast %cst_23 : f32 to vector<1x256xf32>
    %57 = arith.mulf %55, %56 : vector<1x256xf32>
    %cst_24 = arith.constant 1.000000e+00 : f32
    %58 = vector.broadcast %cst_24 : f32 to vector<1x256xf32>
    %59 = arith.subf %57, %58 : vector<1x256xf32>
    %c1_25 = arith.constant 1 : index
    %c0_26 = arith.constant 0 : index
    %c0_27 = arith.constant 0 : index
    %60 = vector.load %arg3[%c1_25, %c0_26, %c0_27] : memref<3x17x256xf32, #tpu.memory_space<vmem>>, vector<1x17x256xf32>
    %61 = vector.shape_cast %60 : vector<1x17x256xf32> to vector<17x256xf32>
    %62 = vector.extract_strided_slice %61 {offsets = [0, 0], sizes = [16, 256], strides = [1, 1]} : vector<17x256xf32> to vector<16x256xf32>
    %63 = vector.extract_strided_slice %61 {offsets = [1, 0], sizes = [16, 256], strides = [1, 1]} : vector<17x256xf32> to vector<16x256xf32>
    %64 = arith.addf %62, %63 : vector<16x256xf32>
    %cst_28 = arith.constant 5.000000e-01 : f32
    %65 = vector.broadcast %cst_28 : f32 to vector<16x256xf32>
    %66 = arith.mulf %64, %65 : vector<16x256xf32>
    %67 = arith.mulf %39, %66 : vector<16x256xf32>
    %cst_29 = arith.constant dense<0.000000e+00> : vector<256xf32>
    %68 = vector.multi_reduction <add>, %67, %cst_29 [0] : vector<16x256xf32> to vector<256xf32>
    %69 = vector.shape_cast %68 : vector<256xf32> to vector<1x256xf32>
    %70 = arith.addf %69, %44 : vector<1x256xf32>
    %cst_30 = arith.constant 2.000000e+00 : f32
    %71 = vector.broadcast %cst_30 : f32 to vector<1x256xf32>
    %72 = arith.mulf %70, %71 : vector<1x256xf32>
    %cst_31 = arith.constant 1.000000e+00 : f32
    %73 = vector.broadcast %cst_31 : f32 to vector<1x256xf32>
    %74 = arith.subf %72, %73 : vector<1x256xf32>
    %c2 = arith.constant 2 : index
    %c0_32 = arith.constant 0 : index
    %c0_33 = arith.constant 0 : index
    %75 = vector.load %arg3[%c2, %c0_32, %c0_33] : memref<3x17x256xf32, #tpu.memory_space<vmem>>, vector<1x17x256xf32>
    %76 = vector.shape_cast %75 : vector<1x17x256xf32> to vector<17x256xf32>
    %77 = vector.extract_strided_slice %76 {offsets = [0, 0], sizes = [16, 256], strides = [1, 1]} : vector<17x256xf32> to vector<16x256xf32>
    %78 = vector.extract_strided_slice %76 {offsets = [1, 0], sizes = [16, 256], strides = [1, 1]} : vector<17x256xf32> to vector<16x256xf32>
    %79 = arith.addf %77, %78 : vector<16x256xf32>
    %cst_34 = arith.constant 5.000000e-01 : f32
    %80 = vector.broadcast %cst_34 : f32 to vector<16x256xf32>
    %81 = arith.mulf %79, %80 : vector<16x256xf32>
    %82 = arith.mulf %39, %81 : vector<16x256xf32>
    %cst_35 = arith.constant dense<0.000000e+00> : vector<256xf32>
    %83 = vector.multi_reduction <add>, %82, %cst_35 [0] : vector<16x256xf32> to vector<256xf32>
    %84 = vector.shape_cast %83 : vector<256xf32> to vector<1x256xf32>
    %85 = arith.addf %84, %44 : vector<1x256xf32>
    %cst_36 = arith.constant 2.000000e+00 : f32
    %86 = vector.broadcast %cst_36 : f32 to vector<1x256xf32>
    %87 = arith.mulf %85, %86 : vector<1x256xf32>
    %cst_37 = arith.constant 1.000000e+00 : f32
    %88 = vector.broadcast %cst_37 : f32 to vector<1x256xf32>
    %89 = arith.subf %87, %88 : vector<1x256xf32>
    %90 = arith.mulf %39, %12 : vector<16x256xf32>
    %cst_38 = arith.constant dense<0.000000e+00> : vector<256xf32>
    %91 = vector.multi_reduction <add>, %90, %cst_38 [0] : vector<16x256xf32> to vector<256xf32>
    %92 = vector.shape_cast %91 : vector<256xf32> to vector<1x256xf32>
    %93 = arith.divf %92, %42 : vector<1x256xf32>
    %94 = arith.cmpf one, %93, %93 : vector<1x256xf32>
    %cst_39 = arith.constant 0x7F800000 : f32
    %95 = vector.broadcast %cst_39 : f32 to vector<1x256xf32>
    %96 = arith.select %94, %95, %93 : vector<1x256xi1>, vector<1x256xf32>
    %97 = vector.broadcast %0 : f32 to vector<1x256xf32>
    %98 = arith.maximumf %97, %96 : vector<1x256xf32>
    %99 = vector.broadcast %1 : f32 to vector<1x256xf32>
    %100 = arith.minimumf %99, %98 : vector<1x256xf32>
    %c0_40 = arith.constant 0 : index
    %c0_41 = arith.constant 0 : index
    %c0_42 = arith.constant 0 : index
    %101 = vector.load %arg6[%c0_40, %c0_41, %c0_42] : memref<3x17x256xf32, #tpu.memory_space<vmem>>, vector<1x17x256xf32>
    %102 = vector.shape_cast %101 : vector<1x17x256xf32> to vector<17x256xf32>
    %103 = vector.extract_strided_slice %102 {offsets = [0, 0], sizes = [16, 256], strides = [1, 1]} : vector<17x256xf32> to vector<16x256xf32>
    %104 = vector.extract_strided_slice %102 {offsets = [1, 0], sizes = [16, 256], strides = [1, 1]} : vector<17x256xf32> to vector<16x256xf32>
    %105 = arith.addf %103, %104 : vector<16x256xf32>
    %cst_43 = arith.constant 5.000000e-01 : f32
    %106 = vector.broadcast %cst_43 : f32 to vector<16x256xf32>
    %107 = arith.mulf %105, %106 : vector<16x256xf32>
    %108 = arith.mulf %39, %107 : vector<16x256xf32>
    %cst_44 = arith.constant dense<0.000000e+00> : vector<256xf32>
    %109 = vector.multi_reduction <add>, %108, %cst_44 [0] : vector<16x256xf32> to vector<256xf32>
    %110 = vector.shape_cast %109 : vector<256xf32> to vector<1x256xf32>
    %111 = arith.addf %110, %44 : vector<1x256xf32>
    %c1_45 = arith.constant 1 : index
    %c0_46 = arith.constant 0 : index
    %c0_47 = arith.constant 0 : index
    %112 = vector.load %arg6[%c1_45, %c0_46, %c0_47] : memref<3x17x256xf32, #tpu.memory_space<vmem>>, vector<1x17x256xf32>
    %113 = vector.shape_cast %112 : vector<1x17x256xf32> to vector<17x256xf32>
    %114 = vector.extract_strided_slice %113 {offsets = [0, 0], sizes = [16, 256], strides = [1, 1]} : vector<17x256xf32> to vector<16x256xf32>
    %115 = vector.extract_strided_slice %113 {offsets = [1, 0], sizes = [16, 256], strides = [1, 1]} : vector<17x256xf32> to vector<16x256xf32>
    %116 = arith.addf %114, %115 : vector<16x256xf32>
    %cst_48 = arith.constant 5.000000e-01 : f32
    %117 = vector.broadcast %cst_48 : f32 to vector<16x256xf32>
    %118 = arith.mulf %116, %117 : vector<16x256xf32>
    %119 = arith.mulf %39, %118 : vector<16x256xf32>
    %cst_49 = arith.constant dense<0.000000e+00> : vector<256xf32>
    %120 = vector.multi_reduction <add>, %119, %cst_49 [0] : vector<16x256xf32> to vector<256xf32>
    %121 = vector.shape_cast %120 : vector<256xf32> to vector<1x256xf32>
    %122 = arith.addf %121, %44 : vector<1x256xf32>
    %c2_50 = arith.constant 2 : index
    %c0_51 = arith.constant 0 : index
    %c0_52 = arith.constant 0 : index
    %123 = vector.load %arg6[%c2_50, %c0_51, %c0_52] : memref<3x17x256xf32, #tpu.memory_space<vmem>>, vector<1x17x256xf32>
    %124 = vector.shape_cast %123 : vector<1x17x256xf32> to vector<17x256xf32>
    %125 = vector.extract_strided_slice %124 {offsets = [0, 0], sizes = [16, 256], strides = [1, 1]} : vector<17x256xf32> to vector<16x256xf32>
    %126 = vector.extract_strided_slice %124 {offsets = [1, 0], sizes = [16, 256], strides = [1, 1]} : vector<17x256xf32> to vector<16x256xf32>
    %127 = arith.addf %125, %126 : vector<16x256xf32>
    %cst_53 = arith.constant 5.000000e-01 : f32
    %128 = vector.broadcast %cst_53 : f32 to vector<16x256xf32>
    %129 = arith.mulf %127, %128 : vector<16x256xf32>
    %130 = arith.mulf %39, %129 : vector<16x256xf32>
    %cst_54 = arith.constant dense<0.000000e+00> : vector<256xf32>
    %131 = vector.multi_reduction <add>, %130, %cst_54 [0] : vector<16x256xf32> to vector<256xf32>
    %132 = vector.shape_cast %131 : vector<256xf32> to vector<1x256xf32>
    %133 = arith.addf %132, %44 : vector<1x256xf32>
    %134 = tpu.concatenate %59, %74, %89, %100, %111, %122, %133 in 0 : vector<1x256xf32>, vector<1x256xf32>, vector<1x256xf32>, vector<1x256xf32>, vector<1x256xf32>, vector<1x256xf32>, vector<1x256xf32> -> vector<7x256xf32>
    %c0_55 = arith.constant 0 : index
    %c0_56 = arith.constant 0 : index
    %135 = vector.load %arg7[%c0_55, %c0_56] : memref<7x256xf32, #tpu.memory_space<vmem>>, vector<7x256xf32>
    tpu.vector_store %arg7[%c0_55, %c0_56], %134 {strides = array<i32>} : memref<7x256xf32, #tpu.memory_space<vmem>>, vector<7x256xf32>,
    return
  }
  func.func @transform_0(%arg0: i32) -> i32 {
    %c0_i32 = arith.constant 0 : i32
    %c0_i32_0 = arith.constant 0 : i32
    return %c0_i32 : i32
  }
  func.func @transform_1(%arg0: i32) -> (i32, i32) {
    %c0_i32 = arith.constant 0 : i32
    %c0_i32_0 = arith.constant 0 : i32
    %c0_i32_1 = arith.constant 0 : i32
    return %c0_i32, %c0_i32_0 : i32, i32
  }
  func.func @transform_2(%arg0: i32) -> (i32, i32, i32) {
    %c0_i32 = arith.constant 0 : i32
    %c0_i32_0 = arith.constant 0 : i32
    %c0_i32_1 = arith.constant 0 : i32
    return %c0_i32, %c0_i32_0, %arg0 : i32, i32, i32
  }
  func.func @transform_3(%arg0: i32) -> (i32, i32) {
    %c0_i32 = arith.constant 0 : i32
    %c0_i32_0 = arith.constant 0 : i32
    return %c0_i32, %arg0 : i32, i32
  }
  func.func @transform_4(%arg0: i32) -> (i32, i32) {
    %c0_i32 = arith.constant 0 : i32
    %c0_i32_0 = arith.constant 0 : i32
    return %c0_i32, %arg0 : i32, i32
  }
  func.func @transform_5(%arg0: i32) -> (i32, i32, i32) {
    %c0_i32 = arith.constant 0 : i32
    %c0_i32_0 = arith.constant 0 : i32
    %c0_i32_1 = arith.constant 0 : i32
    return %c0_i32, %c0_i32_0, %arg0 : i32, i32, i32
  }
  func.func @transform_6(%arg0: i32) -> (i32, i32) {
    %c0_i32 = arith.constant 0 : i32
    %c0_i32_0 = arith.constant 0 : i32
    return %c0_i32, %arg0 : i32, i32
  }
  func.func @transform_7(%arg0: i32) -> (i32, i32) {
    %c0_i32 = arith.constant 0 : i32
    %c0_i32_0 = arith.constant 0 : i32
    return %c0_i32, %arg0 : i32, i32
  }
}

</mosaic_0001>

<llo_original>
// kernel: tpu_custom_call.1
$region0: #{tpu_custom_call.1}
  #allocation0 [shape = 'u32[]', space=smem, size = 0x4, offset = 0x4, fixed_abs, tag = 'smem constant byte address 0x4 - core index']
  #allocation1 [shape = 'u32[144,128]{1,0:T(1,128)}', space=vmem, size = 0x12000, scoped, tag = 'internal scratch']
  %s0 = inlined_call_operand.vmem [shape: f32[2], index: 0, kind: input, shape index: {}]
  %s1 = inlined_call_operand.vmem [shape: f32[17,16], index: 1, kind: input, shape index: {}]
  %s2 = inlined_call_operand.vmem [shape: f32[3,17,2048], index: 2, kind: input, shape index: {}]
  %s3 = inlined_call_operand.vmem [shape: f32[17,2048], index: 3, kind: input, shape index: {}]
  %s4 = inlined_call_operand.vmem [shape: f32[17,2048], index: 4, kind: input, shape index: {}]
  %s5 = inlined_call_operand.vmem [shape: f32[3,17,2048], index: 5, kind: input, shape index: {}]
  %s6 = inlined_call_operand.hbm [shape: f32[7,2048], index: 6, kind: output, shape index: {0}]
  %s7 = inlined_call_operand.hbm [shape: f32[16,2048], index: 7, kind: output, shape index: {1}]
  %8 = xla_tuple %s6, %s7
  %s9 = sld [smem:[#allocation0]]
  $region161: #{tpu_custom_call.1} parent=0
    _
  %s11 = ssub.s32 1, %s9
  %s12 = scalar_select 0, %s11, %s9
  $region1: #{tpu_custom_call.1} parent=0
    #allocation2 [shape = 'u8[512]{0}', space=smem, size = 0x200, scoped, tag = 'input window, operand 0, single buffered']
    #allocation3 [shape = 's32[2]{0}', space=sflag, size = 0x8, scoped, tag = 'scoped memory for tpu_custom_call.1']
    #allocation4 [shape = 's32[2]{0}', space=sflag, size = 0x8, scoped, tag = 'scoped memory for tpu_custom_call.1']
    #allocation5 [shape = 'u8[147456]{0}', space=vmem, size = 0x24000, scoped, tag = 'input window, operand 2']
    #allocation6 [shape = 'u8[49152]{0}', space=vmem, size = 0xc000, scoped, tag = 'input window, operand 3']
    #allocation7 [shape = 'u8[49152]{0}', space=vmem, size = 0xc000, scoped, tag = 'input window, operand 4']
    #allocation8 [shape = 'u8[147456]{0}', space=vmem, size = 0x24000, scoped, tag = 'input window, operand 5']
    #allocation9 [shape = 'u8[16384]{0}', space=vmem, size = 0x4000, scoped, tag = 'output window, operand 0']
    #allocation10 [shape = 'u8[32768]{0}', space=vmem, size = 0x8000, scoped, tag = 'output window, operand 1']
    #allocation11 [shape = 's32[2]{0}', space=sflag, size = 0x8, scoped, tag = 'scoped memory for tpu_custom_call.1']
    %13 = vsyncpa [#allocation4], 0
    %14 = vsyncpa [#allocation3], 0
    %s15 = scalar_lea.sflag [#allocation3], 1
    %16 = vsyncpa %s15, 0
    %17 = vsyncpa [#allocation11], 0
    %s18 = scalar_lea.sflag [#allocation11], 1
    %19 = vsyncpa %s18, 0
    loop: start=0, step=1, limit=10
    $region2: #{tpu_custom_call.1} parent=1 // loop_pre_header
      _
    $region3: #{tpu_custom_call.1} parent=1 // loop_header
      %s21 = sphi 0, %s25
      %p22 = scmp.ge.s32.totalorder %s21, 10
      %s29 = sphi 0, %s29
      %s31 = sphi 0, %s29
      %s32 = sphi 0, %s31
      %s46 = sphi 0, %s32
      %s50 = sphi 0, %s50
      %s52 = sphi 0, %s50
      %s53 = sphi 0, %s52
      %s67 = sphi 0, %s53
      %s73 = sphi 0, %s75
      %s76 = sphi 0, %s73
      %s77 = sphi 0, %s76
      %s93 = sphi 0, %s77
      %s99 = sphi 0, %s101
      %s102 = sphi 0, %s99
      %s103 = sphi 0, %s102
      %s119 = sphi 0, %s103
      %s125 = sphi 0, %s127
      %s128 = sphi 0, %s125
      %s129 = sphi 0, %s128
      %s145 = sphi 0, %s129
      %s151 = sphi 0, %s153
      %s154 = sphi 0, %s151
      %s155 = sphi 0, %s154
      %s171 = sphi 0, %s155
      %s177 = sphi 0, %s179
      %s180 = sphi 0, %s177
      %s181 = sphi 0, %s180
      %s197 = sphi 0, %s181
      %s203 = sphi 0, %s205
      %s206 = sphi 0, %s203
      %s207 = sphi 0, %s206
      %s223 = sphi 0, %s207
    $region4: #{tpu_custom_call.1} parent=1 // loop_header_branch
      %24 = sbr.rel (%p22) target = $region8
    $region5: #{tpu_custom_call.1} parent=1 // loop_body
      %s26 = ssub.s32 %s21, 1
      %s27 = ssub.s32 %s21, 2
      %s28 = sadd.s32 %s21, 1
      %s30 = sadd.s32 %s29, 1
      %p33 = scmp.eq.s32.totalorder %s21, 7
      %p34 = scmp.ne.s32.totalorder %s29, %s31
      %p35 = scmp.eq.s32.totalorder %s21, 0
      %p36 = por %p34, %p35
      %p37 = scmp.ne.s32.totalorder %s29, %s31
      %p38 = scmp.eq.s32.totalorder %s26, 7
      %p39 = por %p37, %p38
      %p40 = scmp.ne.s32.totalorder %s31, %s32
      %p41 = scmp.eq.s32.totalorder %s26, 0
      %p42 = por %p40, %p41
      %p43 = scmp.ne.s32.totalorder %s31, %s32
      %p44 = scmp.eq.s32.totalorder %s27, 7
      %p45 = por %p43, %p44
      %p47 = scmp.ne.s32.totalorder %s32, %s46
      %p48 = scmp.eq.s32.totalorder %s27, 0
      %p49 = por %p47, %p48
      %s51 = sadd.s32 %s50, 1
      %p54 = scmp.eq.s32.totalorder %s21, 7
      %p55 = scmp.ne.s32.totalorder %s50, %s52
      %p56 = scmp.eq.s32.totalorder %s21, 0
      %p57 = por %p55, %p56
      %p58 = scmp.ne.s32.totalorder %s50, %s52
      %p59 = scmp.eq.s32.totalorder %s26, 7
      %p60 = por %p58, %p59
      %p61 = scmp.ne.s32.totalorder %s52, %s53
      %p62 = scmp.eq.s32.totalorder %s26, 0
      %p63 = por %p61, %p62
      %p64 = scmp.ne.s32.totalorder %s52, %s53
      %p65 = scmp.eq.s32.totalorder %s27, 7
      %p66 = por %p64, %p65
      %p68 = scmp.ne.s32.totalorder %s53, %s67
      %p69 = scmp.eq.s32.totalorder %s27, 0
      %p70 = por %p68, %p69
      %s71 = ssub.s32 %s21, %s28
      %p72 = scmp.eq.s32.totalorder %s71, 0
      %s74 = sadd.s32 %s73, 1
      %s75 = scalar_select %p72, %s73, %s74
      %p78 = pneg %p72
      %p79 = scmp.eq.s32.totalorder %s21, 7
      %p80 = por %p78, %p79
      %p81 = scmp.ne.s32.totalorder %s73, %s76
      %p82 = scmp.eq.s32.totalorder %s21, 0
      %p83 = por %p81, %p82
      %p84 = scmp.ne.s32.totalorder %s73, %s76
      %p85 = scmp.eq.s32.totalorder %s26, 7
      %p86 = por %p84, %p85
      %p87 = scmp.ne.s32.totalorder %s76, %s77
      %p88 = scmp.eq.s32.totalorder %s26, 0
      %p89 = por %p87, %p88
      %p90 = scmp.ne.s32.totalorder %s76, %s77
      %p91 = scmp.eq.s32.totalorder %s27, 7
      %p92 = por %p90, %p91
      %p94 = scmp.ne.s32.totalorder %s77, %s93
      %p95 = scmp.eq.s32.totalorder %s27, 0
      %p96 = por %p94, %p95
      %s97 = ssub.s32 %s21, %s28
      %p98 = scmp.eq.s32.totalorder %s97, 0
      %s100 = sadd.s32 %s99, 1
      %s101 = scalar_select %p98, %s99, %s100
      %p104 = pneg %p98
      %p105 = scmp.eq.s32.totalorder %s21, 7
      %p106 = por %p104, %p105
      %p107 = scmp.ne.s32.totalorder %s99, %s102
      %p108 = scmp.eq.s32.totalorder %s21, 0
      %p109 = por %p107, %p108
      %p110 = scmp.ne.s32.totalorder %s99, %s102
      %p111 = scmp.eq.s32.totalorder %s26, 7
      %p112 = por %p110, %p111
      %p113 = scmp.ne.s32.totalorder %s102, %s103
      %p114 = scmp.eq.s32.totalorder %s26, 0
      %p115 = por %p113, %p114
      %p116 = scmp.ne.s32.totalorder %s102, %s103
      %p117 = scmp.eq.s32.totalorder %s27, 7
      %p118 = por %p116, %p117
      %p120 = scmp.ne.s32.totalorder %s103, %s119
      %p121 = scmp.eq.s32.totalorder %s27, 0
      %p122 = por %p120, %p121
      %s123 = ssub.s32 %s21, %s28
      %p124 = scmp.eq.s32.totalorder %s123, 0
      %s126 = sadd.s32 %s125, 1
      %s127 = scalar_select %p124, %s125, %s126
      %p130 = pneg %p124
      %p131 = scmp.eq.s32.totalorder %s21, 7
      %p132 = por %p130, %p131
      %p133 = scmp.ne.s32.totalorder %s125, %s128
      %p134 = scmp.eq.s32.totalorder %s21, 0
      %p135 = por %p133, %p134
      %p136 = scmp.ne.s32.totalorder %s125, %s128
      %p137 = scmp.eq.s32.totalorder %s26, 7
      %p138 = por %p136, %p137
      %p139 = scmp.ne.s32.totalorder %s128, %s129
      %p140 = scmp.eq.s32.totalorder %s26, 0
      %p141 = por %p139, %p140
      %p142 = scmp.ne.s32.totalorder %s128, %s129
      %p143 = scmp.eq.s32.totalorder %s27, 7
      %p144 = por %p142, %p143
      %p146 = scmp.ne.s32.totalorder %s129, %s145
      %p147 = scmp.eq.s32.totalorder %s27, 0
      %p148 = por %p146, %p147
      %s149 = ssub.s32 %s21, %s28
      %p150 = scmp.eq.s32.totalorder %s149, 0
      %s152 = sadd.s32 %s151, 1
      %s153 = scalar_select %p150, %s151, %s152
      %p156 = pneg %p150
      %p157 = scmp.eq.s32.totalorder %s21, 7
      %p158 = por %p156, %p157
      %p159 = scmp.ne.s32.totalorder %s151, %s154
      %p160 = scmp.eq.s32.totalorder %s21, 0
      %p161 = por %p159, %p160
      %p162 = scmp.ne.s32.totalorder %s151, %s154
      %p163 = scmp.eq.s32.totalorder %s26, 7
      %p164 = por %p162, %p163
      %p165 = scmp.ne.s32.totalorder %s154, %s155
      %p166 = scmp.eq.s32.totalorder %s26, 0
      %p167 = por %p165, %p166
      %p168 = scmp.ne.s32.totalorder %s154, %s155
      %p169 = scmp.eq.s32.totalorder %s27, 7
      %p170 = por %p168, %p169
      %p172 = scmp.ne.s32.totalorder %s155, %s171
      %p173 = scmp.eq.s32.totalorder %s27, 0
      %p174 = por %p172, %p173
      %s175 = ssub.s32 %s21, %s28
      %p176 = scmp.eq.s32.totalorder %s175, 0
      %s178 = sadd.s32 %s177, 1
      %s179 = scalar_select %p176, %s177, %s178
      %p182 = pneg %p176
      %p183 = scmp.eq.s32.totalorder %s21, 7
      %p184 = por %p182, %p183
      %p185 = scmp.ne.s32.totalorder %s177, %s180
      %p186 = scmp.eq.s32.totalorder %s21, 0
      %p187 = por %p185, %p186
      %p188 = scmp.ne.s32.totalorder %s177, %s180
      %p189 = scmp.eq.s32.totalorder %s26, 7
      %p190 = por %p188, %p189
      %p191 = scmp.ne.s32.totalorder %s180, %s181
      %p192 = scmp.eq.s32.totalorder %s26, 0
      %p193 = por %p191, %p192
      %p194 = scmp.ne.s32.totalorder %s180, %s181
      %p195 = scmp.eq.s32.totalorder %s27, 7
      %p196 = por %p194, %p195
      %p198 = scmp.ne.s32.totalorder %s181, %s197
      %p199 = scmp.eq.s32.totalorder %s27, 0
      %p200 = por %p198, %p199
      %s201 = ssub.s32 %s21, %s28
      %p202 = scmp.eq.s32.totalorder %s201, 0
      %s204 = sadd.s32 %s203, 1
      %s205 = scalar_select %p202, %s203, %s204
      %p208 = pneg %p202
      %p209 = scmp.eq.s32.totalorder %s21, 7
      %p210 = por %p208, %p209
      %p211 = scmp.ne.s32.totalorder %s203, %s206
      %p212 = scmp.eq.s32.totalorder %s21, 0
      %p213 = por %p211, %p212
      %p214 = scmp.ne.s32.totalorder %s203, %s206
      %p215 = scmp.eq.s32.totalorder %s26, 7
      %p216 = por %p214, %p215
      %p217 = scmp.ne.s32.totalorder %s206, %s207
      %p218 = scmp.eq.s32.totalorder %s26, 0
      %p219 = por %p217, %p218
      %p220 = scmp.ne.s32.totalorder %s206, %s207
      %p221 = scmp.eq.s32.totalorder %s27, 7
      %p222 = por %p220, %p221
      %p224 = scmp.ne.s32.totalorder %s207, %s223
      %p225 = scmp.eq.s32.totalorder %s27, 0
      %p226 = por %p224, %p225
      %p227 = scmp.le.s32.totalorder 1, %s21
      %p228 = scmp.lt.s32.totalorder %s21, 9
      %p229 = pnand %p227, %p228
      %p230 = pneg %p229
      // Predicated region
      $region9: #{tpu_custom_call.1} parent=5 // pred_check
        _
      $region10: #{tpu_custom_call.1} parent=5 // pred_check_branch
        %232 = sbr.rel (%p229) target = $region12
      $region11: #{tpu_custom_call.1} parent=5 // pred_region
        %s233 = ssub.s32 %s21, 1
        // Predicated region
        $region13: #{tpu_custom_call.1} parent=11 // pred_check
          %p234 = pneg %p42
        $region14: #{tpu_custom_call.1} parent=11 // pred_check_branch
          %236 = sbr.rel (%p234) target = $region16
        $region15: #{tpu_custom_call.1} parent=11 // pred_region
          %s238 = ssub.s32 16, 16
          %239 = vsyncadd [#allocation4], %s238
          %s241 = sshll.u32 %s0, 4
          %s242 = int_to_ptr.vmem [resolvable:$true] %s241
          %244 = dma.vmem_to_smem %s242, 16, [#allocation2], [#allocation4]
        $region16: #{tpu_custom_call.1} parent=11 // pred_fallthru
          _
        // Predicated region
        $region17: #{tpu_custom_call.1} parent=11 // pred_check
          %p245 = pneg %p63
        $region18: #{tpu_custom_call.1} parent=11 // pred_check_branch
          %247 = sbr.rel (%p245) target = $region20
        $region19: #{tpu_custom_call.1} parent=11 // pred_region
          _
        $region20: #{tpu_custom_call.1} parent=11 // pred_fallthru
          _
      $region12: #{tpu_custom_call.1} parent=5 // pred_fallthru
        _
      %p248 = scmp.lt.s32.totalorder %s21, 8
      // Predicated region
      $region21: #{tpu_custom_call.1} parent=5 // pred_check
        %p249 = pneg %p248
      $region22: #{tpu_custom_call.1} parent=5 // pred_check_branch
        %251 = sbr.rel (%p249) target = $region24
      $region23: #{tpu_custom_call.1} parent=5 // pred_region
        // Predicated region
        $region25: #{tpu_custom_call.1} parent=23 // pred_check
          %p252 = pneg %p83
        $region26: #{tpu_custom_call.1} parent=23 // pred_check_branch
          %254 = sbr.rel (%p252) target = $region28
        $region27: #{tpu_custom_call.1} parent=23 // pred_region
          %s255 = sand.u32 %s73, 1
          %s256 = sand.u32 %s73, 1
          %s257 = smul.addr %s256, 144
          %s258 = scalar_lea.vmem [#allocation5], %s257
          %s259 = smul.u32 2, %s21
          %s260 = smul.addr %s259, 8
          %s261 = scalar_lea.vmem %s2, %s260
          // Predicated region
          $region29: #{tpu_custom_call.1} parent=27 // pred_check
            _
          $region30: #{tpu_custom_call.1} parent=27 // pred_check_branch
            %263 = sbr.rel (0) target = $region32
          $region31: #{tpu_custom_call.1} parent=27 // pred_region
            // Predicated region
            $region33: #{tpu_custom_call.1} parent=31 // pred_check
              _
            $region34: #{tpu_custom_call.1} parent=31 // pred_check_branch
              %265 = sbr.rel (0) target = $region36
            $region35: #{tpu_custom_call.1} parent=31 // pred_region
              loop: start=0, step=1, limit=1
              $region37: #{tpu_custom_call.1} parent=35 // loop_pre_header
                _
              $region38: #{tpu_custom_call.1} parent=35 // loop_header
                %s267 = sphi 0, %s271
                %p268 = scmp.ge.s32.totalorder %s267, 1
                %s272 = sphi %s261, %s261
                %s273 = sphi %s258, %s258
              $region39: #{tpu_custom_call.1} parent=35 // loop_header_branch
                %270 = sbr.rel (%p268) target = $region43
              $region40: #{tpu_custom_call.1} parent=35 // loop_body
                %v274 = vld [vmem:[%s272] sm:$0xff]
                %275 = vst [vmem:[%s273] sm:$0xff] %v274
                %v276 = vld [vmem:[%s272 + $0x8] sm:$0xff]
                %277 = vst [vmem:[%s273 + $0x8] sm:$0xff] %v276
                %v278 = vld [vmem:[%s272 + $0x80] sm:$0xff]
                %279 = vst [vmem:[%s273 + $0x10] sm:$0xff] %v278
                %v280 = vld [vmem:[%s272 + $0x88] sm:$0xff]
                %281 = vst [vmem:[%s273 + $0x18] sm:$0xff] %v280
                %v282 = vld [vmem:[%s272 + $0x100] sm:$0xff]
                %283 = vst [vmem:[%s273 + $0x20] sm:$0xff] %v282
                %v284 = vld [vmem:[%s272 + $0x108] sm:$0xff]
                %285 = vst [vmem:[%s273 + $0x28] sm:$0xff] %v284
                %v286 = vld [vmem:[%s272 + $0x180] sm:$0xff]
                %287 = vst [vmem:[%s273 + $0x30] sm:$0xff] %v286
                %v288 = vld [vmem:[%s272 + $0x188] sm:$0xff]
                %289 = vst [vmem:[%s273 + $0x38] sm:$0xff] %v288
                %v290 = vld [vmem:[%s272 + $0x200] sm:$0xff]
                %291 = vst [vmem:[%s273 + $0x40] sm:$0xff] %v290
                %v292 = vld [vmem:[%s272 + $0x208] sm:$0xff]
                %293 = vst [vmem:[%s273 + $0x48] sm:$0xff] %v292
                %v294 = vld [vmem:[%s272 + $0x280] sm:$0xff]
                %295 = vst [vmem:[%s273 + $0x50] sm:$0xff] %v294
                %v296 = vld [vmem:[%s272 + $0x288] sm:$0xff]
                %297 = vst [vmem:[%s273 + $0x58] sm:$0xff] %v296
                %v298 = vld [vmem:[%s272 + $0x300] sm:$0xff]
                %299 = vst [vmem:[%s273 + $0x60] sm:$0xff] %v298
                %v300 = vld [vmem:[%s272 + $0x308] sm:$0xff]
                %301 = vst [vmem:[%s273 + $0x68] sm:$0xff] %v300
                %v302 = vld [vmem:[%s272 + $0x380] sm:$0xff]
                %303 = vst [vmem:[%s273 + $0x70] sm:$0xff] %v302
                %v304 = vld [vmem:[%s272 + $0x388] sm:$0xff]
                %305 = vst [vmem:[%s273 + $0x78] sm:$0xff] %v304
                %v306 = vld [vmem:[%s272 + $0x400] sm:$0xff]
                %307 = vst [vmem:[%s273 + $0x80] sm:$0xff] %v306
                %v308 = vld [vmem:[%s272 + $0x408] sm:$0xff]
                %309 = vst [vmem:[%s273 + $0x88] sm:$0xff] %v308
              $region41: #{tpu_custom_call.1} parent=35 // loop_footer
                %s271 = sadd.s32 1, %s267
              $region42: #{tpu_custom_call.1} parent=35 // loop_footer_branch
                %266 = sbr.rel target = $region38
              $region43: #{tpu_custom_call.1} parent=35 // loop_exit
                _
            $region36: #{tpu_custom_call.1} parent=31 // pred_fallthru
              _
            // Predicated region
            $region44: #{tpu_custom_call.1} parent=31 // pred_check
              _
            $region45: #{tpu_custom_call.1} parent=31 // pred_check_branch
              %311 = sbr.rel target = $region47
            $region46: #{tpu_custom_call.1} parent=31 // pred_region
              _
            $region47: #{tpu_custom_call.1} parent=31 // pred_fallthru
              _
          $region32: #{tpu_custom_call.1} parent=27 // pred_fallthru
            _
          %312 = vnop
        $region28: #{tpu_custom_call.1} parent=23 // pred_fallthru
          _
        // Predicated region
        $region48: #{tpu_custom_call.1} parent=23 // pred_check
          %p313 = pneg %p109
        $region49: #{tpu_custom_call.1} parent=23 // pred_check_branch
          %315 = sbr.rel (%p313) target = $region51
        $region50: #{tpu_custom_call.1} parent=23 // pred_region
          %s316 = sand.u32 %s99, 1
          %s317 = sand.u32 %s99, 1
          %s318 = smul.addr %s317, 48
          %s319 = scalar_lea.vmem [#allocation6], %s318
          %s320 = smul.u32 2, %s21
          %s321 = smul.addr %s320, 8
          %s322 = scalar_lea.vmem %s3, %s321
          // Predicated region
          $region52: #{tpu_custom_call.1} parent=50 // pred_check
            _
          $region53: #{tpu_custom_call.1} parent=50 // pred_check_branch
            %324 = sbr.rel (0) target = $region55
          $region54: #{tpu_custom_call.1} parent=50 // pred_region
            // Predicated region
            $region56: #{tpu_custom_call.1} parent=54 // pred_check
              _
            $region57: #{tpu_custom_call.1} parent=54 // pred_check_branch
              %326 = sbr.rel (0) target = $region59
            $region58: #{tpu_custom_call.1} parent=54 // pred_region
              loop: start=0, step=1, limit=1
              $region60: #{tpu_custom_call.1} parent=58 // loop_pre_header
                _
              $region61: #{tpu_custom_call.1} parent=58 // loop_header
                %s328 = sphi 0, %s332
                %p329 = scmp.ge.s32.totalorder %s328, 1
                %s333 = sphi %s322, %s322
                %s334 = sphi %s319, %s319
              $region62: #{tpu_custom_call.1} parent=58 // loop_header_branch
                %331 = sbr.rel (%p329) target = $region66
              $region63: #{tpu_custom_call.1} parent=58 // loop_body
                %v335 = vld [vmem:[%s333] sm:$0xff]
                %336 = vst [vmem:[%s334] sm:$0xff] %v335
                %v337 = vld [vmem:[%s333 + $0x8] sm:$0xff]
                %338 = vst [vmem:[%s334 + $0x8] sm:$0xff] %v337
                %v339 = vld [vmem:[%s333 + $0x80] sm:$0xff]
                %340 = vst [vmem:[%s334 + $0x10] sm:$0xff] %v339
                %v341 = vld [vmem:[%s333 + $0x88] sm:$0xff]
                %342 = vst [vmem:[%s334 + $0x18] sm:$0xff] %v341
                %v343 = vld [vmem:[%s333 + $0x100] sm:$0xff]
                %344 = vst [vmem:[%s334 + $0x20] sm:$0xff] %v343
                %v345 = vld [vmem:[%s333 + $0x108] sm:$0xff]
                %346 = vst [vmem:[%s334 + $0x28] sm:$0xff] %v345
              $region64: #{tpu_custom_call.1} parent=58 // loop_footer
                %s332 = sadd.s32 1, %s328
              $region65: #{tpu_custom_call.1} parent=58 // loop_footer_branch
                %327 = sbr.rel target = $region61
              $region66: #{tpu_custom_call.1} parent=58 // loop_exit
                _
            $region59: #{tpu_custom_call.1} parent=54 // pred_fallthru
              _
            // Predicated region
            $region67: #{tpu_custom_call.1} parent=54 // pred_check
              _
            $region68: #{tpu_custom_call.1} parent=54 // pred_check_branch
              %348 = sbr.rel target = $region70
            $region69: #{tpu_custom_call.1} parent=54 // pred_region
              _
            $region70: #{tpu_custom_call.1} parent=54 // pred_fallthru
              _
          $region55: #{tpu_custom_call.1} parent=50 // pred_fallthru
            _
          %349 = vnop
        $region51: #{tpu_custom_call.1} parent=23 // pred_fallthru
          _
        // Predicated region
        $region71: #{tpu_custom_call.1} parent=23 // pred_check
          %p350 = pneg %p135
        $region72: #{tpu_custom_call.1} parent=23 // pred_check_branch
          %352 = sbr.rel (%p350) target = $region74
        $region73: #{tpu_custom_call.1} parent=23 // pred_region
          %s353 = sand.u32 %s125, 1
          %s354 = sand.u32 %s125, 1
          %s355 = smul.addr %s354, 48
          %s356 = scalar_lea.vmem [#allocation7], %s355
          %s357 = smul.u32 2, %s21
          %s358 = smul.addr %s357, 8
          %s359 = scalar_lea.vmem %s4, %s358
          // Predicated region
          $region75: #{tpu_custom_call.1} parent=73 // pred_check
            _
          $region76: #{tpu_custom_call.1} parent=73 // pred_check_branch
            %361 = sbr.rel (0) target = $region78
          $region77: #{tpu_custom_call.1} parent=73 // pred_region
            // Predicated region
            $region79: #{tpu_custom_call.1} parent=77 // pred_check
              _
            $region80: #{tpu_custom_call.1} parent=77 // pred_check_branch
              %363 = sbr.rel (0) target = $region82
            $region81: #{tpu_custom_call.1} parent=77 // pred_region
              loop: start=0, step=1, limit=1
              $region83: #{tpu_custom_call.1} parent=81 // loop_pre_header
                _
              $region84: #{tpu_custom_call.1} parent=81 // loop_header
                %s365 = sphi 0, %s369
                %p366 = scmp.ge.s32.totalorder %s365, 1
                %s370 = sphi %s359, %s359
                %s371 = sphi %s356, %s356
              $region85: #{tpu_custom_call.1} parent=81 // loop_header_branch
                %368 = sbr.rel (%p366) target = $region89
              $region86: #{tpu_custom_call.1} parent=81 // loop_body
                %v372 = vld [vmem:[%s370] sm:$0xff]
                %373 = vst [vmem:[%s371] sm:$0xff] %v372
                %v374 = vld [vmem:[%s370 + $0x8] sm:$0xff]
                %375 = vst [vmem:[%s371 + $0x8] sm:$0xff] %v374
                %v376 = vld [vmem:[%s370 + $0x80] sm:$0xff]
                %377 = vst [vmem:[%s371 + $0x10] sm:$0xff] %v376
                %v378 = vld [vmem:[%s370 + $0x88] sm:$0xff]
                %379 = vst [vmem:[%s371 + $0x18] sm:$0xff] %v378
                %v380 = vld [vmem:[%s370 + $0x100] sm:$0xff]
                %381 = vst [vmem:[%s371 + $0x20] sm:$0xff] %v380
                %v382 = vld [vmem:[%s370 + $0x108] sm:$0xff]
                %383 = vst [vmem:[%s371 + $0x28] sm:$0xff] %v382
              $region87: #{tpu_custom_call.1} parent=81 // loop_footer
                %s369 = sadd.s32 1, %s365
              $region88: #{tpu_custom_call.1} parent=81 // loop_footer_branch
                %364 = sbr.rel target = $region84
              $region89: #{tpu_custom_call.1} parent=81 // loop_exit
                _
            $region82: #{tpu_custom_call.1} parent=77 // pred_fallthru
              _
            // Predicated region
            $region90: #{tpu_custom_call.1} parent=77 // pred_check
              _
            $region91: #{tpu_custom_call.1} parent=77 // pred_check_branch
              %385 = sbr.rel target = $region93
            $region92: #{tpu_custom_call.1} parent=77 // pred_region
              _
            $region93: #{tpu_custom_call.1} parent=77 // pred_fallthru
              _
          $region78: #{tpu_custom_call.1} parent=73 // pred_fallthru
            _
          %386 = vnop
        $region74: #{tpu_custom_call.1} parent=23 // pred_fallthru
          _
        // Predicated region
        $region94: #{tpu_custom_call.1} parent=23 // pred_check
          %p387 = pneg %p161
        $region95: #{tpu_custom_call.1} parent=23 // pred_check_branch
          %389 = sbr.rel (%p387) target = $region97
        $region96: #{tpu_custom_call.1} parent=23 // pred_region
          %s390 = sand.u32 %s151, 1
          %s391 = sand.u32 %s151, 1
          %s392 = smul.addr %s391, 144
          %s393 = scalar_lea.vmem [#allocation8], %s392
          %s394 = smul.u32 2, %s21
          %s395 = smul.addr %s394, 8
          %s396 = scalar_lea.vmem %s5, %s395
          // Predicated region
          $region98: #{tpu_custom_call.1} parent=96 // pred_check
            _
          $region99: #{tpu_custom_call.1} parent=96 // pred_check_branch
            %398 = sbr.rel (0) target = $region101
          $region100: #{tpu_custom_call.1} parent=96 // pred_region
            // Predicated region
            $region102: #{tpu_custom_call.1} parent=100 // pred_check
              _
            $region103: #{tpu_custom_call.1} parent=100 // pred_check_branch
              %400 = sbr.rel (0) target = $region105
            $region104: #{tpu_custom_call.1} parent=100 // pred_region
              loop: start=0, step=1, limit=1
              $region106: #{tpu_custom_call.1} parent=104 // loop_pre_header
                _
              $region107: #{tpu_custom_call.1} parent=104 // loop_header
                %s402 = sphi 0, %s406
                %p403 = scmp.ge.s32.totalorder %s402, 1
                %s407 = sphi %s396, %s396
                %s408 = sphi %s393, %s393
              $region108: #{tpu_custom_call.1} parent=104 // loop_header_branch
                %405 = sbr.rel (%p403) target = $region112
              $region109: #{tpu_custom_call.1} parent=104 // loop_body
                %v409 = vld [vmem:[%s407] sm:$0xff]
                %410 = vst [vmem:[%s408] sm:$0xff] %v409
                %v411 = vld [vmem:[%s407 + $0x8] sm:$0xff]
                %412 = vst [vmem:[%s408 + $0x8] sm:$0xff] %v411
                %v413 = vld [vmem:[%s407 + $0x80] sm:$0xff]
                %414 = vst [vmem:[%s408 + $0x10] sm:$0xff] %v413
                %v415 = vld [vmem:[%s407 + $0x88] sm:$0xff]
                %416 = vst [vmem:[%s408 + $0x18] sm:$0xff] %v415
                %v417 = vld [vmem:[%s407 + $0x100] sm:$0xff]
                %418 = vst [vmem:[%s408 + $0x20] sm:$0xff] %v417
                %v419 = vld [vmem:[%s407 + $0x108] sm:$0xff]
                %420 = vst [vmem:[%s408 + $0x28] sm:$0xff] %v419
                %v421 = vld [vmem:[%s407 + $0x180] sm:$0xff]
                %422 = vst [vmem:[%s408 + $0x30] sm:$0xff] %v421
                %v423 = vld [vmem:[%s407 + $0x188] sm:$0xff]
                %424 = vst [vmem:[%s408 + $0x38] sm:$0xff] %v423
                %v425 = vld [vmem:[%s407 + $0x200] sm:$0xff]
                %426 = vst [vmem:[%s408 + $0x40] sm:$0xff] %v425
                %v427 = vld [vmem:[%s407 + $0x208] sm:$0xff]
                %428 = vst [vmem:[%s408 + $0x48] sm:$0xff] %v427
                %v429 = vld [vmem:[%s407 + $0x280] sm:$0xff]
                %430 = vst [vmem:[%s408 + $0x50] sm:$0xff] %v429
                %v431 = vld [vmem:[%s407 + $0x288] sm:$0xff]
                %432 = vst [vmem:[%s408 + $0x58] sm:$0xff] %v431
                %v433 = vld [vmem:[%s407 + $0x300] sm:$0xff]
                %434 = vst [vmem:[%s408 + $0x60] sm:$0xff] %v433
                %v435 = vld [vmem:[%s407 + $0x308] sm:$0xff]
                %436 = vst [vmem:[%s408 + $0x68] sm:$0xff] %v435
                %v437 = vld [vmem:[%s407 + $0x380] sm:$0xff]
                %438 = vst [vmem:[%s408 + $0x70] sm:$0xff] %v437
                %v439 = vld [vmem:[%s407 + $0x388] sm:$0xff]
                %440 = vst [vmem:[%s408 + $0x78] sm:$0xff] %v439
                %v441 = vld [vmem:[%s407 + $0x400] sm:$0xff]
                %442 = vst [vmem:[%s408 + $0x80] sm:$0xff] %v441
                %v443 = vld [vmem:[%s407 + $0x408] sm:$0xff]
                %444 = vst [vmem:[%s408 + $0x88] sm:$0xff] %v443
              $region110: #{tpu_custom_call.1} parent=104 // loop_footer
                %s406 = sadd.s32 1, %s402
              $region111: #{tpu_custom_call.1} parent=104 // loop_footer_branch
                %401 = sbr.rel target = $region107
              $region112: #{tpu_custom_call.1} parent=104 // loop_exit
                _
            $region105: #{tpu_custom_call.1} parent=100 // pred_fallthru
              _
            // Predicated region
            $region113: #{tpu_custom_call.1} parent=100 // pred_check
              _
            $region114: #{tpu_custom_call.1} parent=100 // pred_check_branch
              %446 = sbr.rel target = $region116
            $region115: #{tpu_custom_call.1} parent=100 // pred_region
              _
            $region116: #{tpu_custom_call.1} parent=100 // pred_fallthru
              _
          $region101: #{tpu_custom_call.1} parent=96 // pred_fallthru
            _
          %447 = vnop
        $region97: #{tpu_custom_call.1} parent=23 // pred_fallthru
          _
      $region24: #{tpu_custom_call.1} parent=5 // pred_fallthru
        _
      %p448 = scmp.le.s32.totalorder 1, %s21
      %p449 = scmp.lt.s32.totalorder %s21, 9
      %p450 = pnand %p448, %p449
      %p451 = pneg %p450
      // Predicated region
      $region117: #{tpu_custom_call.1} parent=5 // pred_check
        _
      $region118: #{tpu_custom_call.1} parent=5 // pred_check_branch
        %453 = sbr.rel (%p450) target = $region120
      $region119: #{tpu_custom_call.1} parent=5 // pred_region
        %s454 = ssub.s32 %s21, 1
        // Predicated region
        $region121: #{tpu_custom_call.1} parent=119 // pred_check
          %p455 = pneg %p42
        $region122: #{tpu_custom_call.1} parent=119 // pred_check_branch
          %457 = sbr.rel (%p455) target = $region124
        $region123: #{tpu_custom_call.1} parent=119 // pred_region
          %458 = dma.done [#allocation4], 16
        $region124: #{tpu_custom_call.1} parent=119 // pred_fallthru
          _
        %s459 = sand.u32 %s76, 1
        %s460 = sand.u32 %s76, 1
        %s461 = smul.addr %s460, 144
        %s462 = scalar_lea.vmem [#allocation5], %s461
        // Predicated region
        $region125: #{tpu_custom_call.1} parent=119 // pred_check
          %p463 = pneg %p89
        $region126: #{tpu_custom_call.1} parent=119 // pred_check_branch
          %465 = sbr.rel (%p463) target = $region128
        $region127: #{tpu_custom_call.1} parent=119 // pred_region
          _
        $region128: #{tpu_custom_call.1} parent=119 // pred_fallthru
          _
        %s466 = sand.u32 %s102, 1
        %s467 = sand.u32 %s102, 1
        %s468 = smul.addr %s467, 48
        %s469 = scalar_lea.vmem [#allocation6], %s468
        // Predicated region
        $region129: #{tpu_custom_call.1} parent=119 // pred_check
          %p470 = pneg %p115
        $region130: #{tpu_custom_call.1} parent=119 // pred_check_branch
          %472 = sbr.rel (%p470) target = $region132
        $region131: #{tpu_custom_call.1} parent=119 // pred_region
          _
        $region132: #{tpu_custom_call.1} parent=119 // pred_fallthru
          _
        %s473 = sand.u32 %s128, 1
        %s474 = sand.u32 %s128, 1
        %s475 = smul.addr %s474, 48
        %s476 = scalar_lea.vmem [#allocation7], %s475
        // Predicated region
        $region133: #{tpu_custom_call.1} parent=119 // pred_check
          %p477 = pneg %p141
        $region134: #{tpu_custom_call.1} parent=119 // pred_check_branch
          %479 = sbr.rel (%p477) target = $region136
        $region135: #{tpu_custom_call.1} parent=119 // pred_region
          _
        $region136: #{tpu_custom_call.1} parent=119 // pred_fallthru
          _
        %s480 = sand.u32 %s154, 1
        %s481 = sand.u32 %s154, 1
        %s482 = smul.addr %s481, 144
        %s483 = scalar_lea.vmem [#allocation8], %s482
        // Predicated region
        $region137: #{tpu_custom_call.1} parent=119 // pred_check
          %p484 = pneg %p167
        $region138: #{tpu_custom_call.1} parent=119 // pred_check_branch
          %486 = sbr.rel (%p484) target = $region140
        $region139: #{tpu_custom_call.1} parent=119 // pred_region
          _
        $region140: #{tpu_custom_call.1} parent=119 // pred_fallthru
          _
        %487 = sfence
        %p488 = pneg %p42
        %p489 = pneg %p39
        %p490 = pneg %p63
        %p491 = pneg %p60
        %s492 = sand.u32 %s76, 1
        %s493 = sand.u32 %s76, 1
        %s494 = smul.addr %s493, 144
        %s495 = scalar_lea.vmem [#allocation5], %s494
        %p496 = pneg %p89
        %p497 = pneg %p86
        %s498 = sand.u32 %s102, 1
        %s499 = sand.u32 %s102, 1
        %s500 = smul.addr %s499, 48
        %s501 = scalar_lea.vmem [#allocation6], %s500
        %p502 = pneg %p115
        %p503 = pneg %p112
        %s504 = sand.u32 %s128, 1
        %s505 = sand.u32 %s128, 1
        %s506 = smul.addr %s505, 48
        %s507 = scalar_lea.vmem [#allocation7], %s506
        %p508 = pneg %p141
        %p509 = pneg %p138
        %s510 = sand.u32 %s154, 1
        %s511 = sand.u32 %s154, 1
        %s512 = smul.addr %s511, 144
        %s513 = scalar_lea.vmem [#allocation8], %s512
        %p514 = pneg %p167
        %p515 = pneg %p164
        %p516 = pneg %p193
        %p517 = pneg %p190
        %s518 = sand.u32 %s180, 1
        %s519 = scalar_lea.sflag [#allocation3], %s518
        %s520 = sand.u32 %s180, 1
        %s521 = smul.addr %s520, 16
        %s522 = scalar_lea.vmem [#allocation9], %s521
        %p523 = pneg %p219
        %p524 = pneg %p216
        %s525 = sand.u32 %s206, 1
        %s526 = scalar_lea.sflag [#allocation11], %s525
        %s527 = sand.u32 %s206, 1
        %s528 = smul.addr %s527, 32
        %s529 = scalar_lea.vmem [#allocation10], %s528
        %s530 = smul.u32 2, %s26
        %s531 = smul.u32 2, %s26
        %s532 = smul.u32 2, %s26
        %s533 = smul.u32 2, %s26
        %s534 = smul.u32 2, %s26
        %s535 = smul.u32 2, %s26
        %s536 = sld [smem:[#allocation2]]
        %s537 = sld [smem:[#allocation2 + $0x1]]
        %v538 = vld [vmem:[%s1] sm:$0xff]
        %v539 = vld [vmem:[%s1 + $0x8] sm:$0xff]
        %v540 = vld [vmem:[%s1 + $0x10] sm:$0x1]
        %v541 = vld [vmem:[%s476] sm:$0xff]
        %v542 = vld [vmem:[%s476 + $0x8] sm:$0xff]
        %v543 = vld [vmem:[%s476 + $0x10] sm:$0xff]
        %v544 = vld [vmem:[%s476 + $0x18] sm:$0xff]
        %v545 = vld [vmem:[%s476 + $0x20] sm:$0x1]
        %v546 = vld [vmem:[%s476 + $0x28] sm:$0x1]
        %v547 = vld [vmem:[%s469] sm:$0xff]
        %v548 = vld [vmem:[%s469 + $0x8] sm:$0xff]
        %v549 = vld [vmem:[%s469 + $0x10] sm:$0xff]
        %v550 = vld [vmem:[%s469 + $0x18] sm:$0xff]
        %v551 = vld [vmem:[%s469 + $0x20] sm:$0x1]
        %v552 = vld [vmem:[%s469 + $0x28] sm:$0x1]
        %vm557 = vcmask 1040384
        %v558 = vrot.slane %v541, 7
        %v559 = vrot.slane %v542, 7
        %v560 = vrot.slane %v543, 7
        %v561 = vsel %vm557, %v558, %v560
        %v562 = vrot.slane %v544, 7
        %v563 = vsel %vm557, %v559, %v562
        %v570 = vsub.f32 %v541, %v558
        %v571 = vsub.f32 %v542, %v559
        %v572 = vsub.f32 %v543, %v561
        %v573 = vsub.f32 %v544, %v563
        %v574 = vsub.f32 %v545, %v560
        %v575 = vsub.f32 %v546, %v562
        %vm578 = vcmask 1046528
        %v579 = vrot.slane %v541, 1
        %v580 = vrot.slane %v543, 1
        %v581 = vsel %vm578, %v579, %v580
        %v582 = vrot.slane %v542, 1
        %v583 = vrot.slane %v544, 1
        %v584 = vsel %vm578, %v582, %v583
        %v585 = vrot.slane %v545, 1
        %v586 = vsel %vm578, %v580, %v585
        %v587 = vrot.slane %v546, 1
        %v588 = vsel %vm578, %v583, %v587
        %v593 = vadd.f32 %v541, %v581
        %v594 = vadd.f32 %v542, %v584
        %v595 = vadd.f32 %v543, %v586
        %v596 = vadd.f32 %v544, %v588
        %v597 = vmul.f32 %v593, 0.5
        %v598 = vmul.f32 %v594, 0.5
        %v599 = vmul.f32 %v595, 0.5
        %v600 = vmul.f32 %v596, 0.5
        %v607 = vrot.slane %v547, 1
        %v608 = vrot.slane %v549, 1
        %v609 = vsel %vm578, %v607, %v608
        %v610 = vrot.slane %v548, 1
        %v611 = vrot.slane %v550, 1
        %v612 = vsel %vm578, %v610, %v611
        %v613 = vrot.slane %v551, 1
        %v614 = vsel %vm578, %v608, %v613
        %v615 = vrot.slane %v552, 1
        %v616 = vsel %vm578, %v611, %v615
        %v621 = vadd.f32 %v547, %v609
        %v622 = vadd.f32 %v548, %v612
        %v623 = vadd.f32 %v549, %v614
        %v624 = vadd.f32 %v550, %v616
        %v625 = vmul.f32 %v621, 0.5
        %v626 = vmul.f32 %v622, 0.5
        %v627 = vmul.f32 %v623, 0.5
        %v628 = vmul.f32 %v624, 0.5
        %v629 = vsub.f32 %v625, 1.0
        %v630 = vsub.f32 %v626, 1.0
        %v631 = vsub.f32 %v627, 1.0
        %v632 = vsub.f32 %v628, 1.0
        %v633 = vmax.f32 %v629, 0.0
        %v634 = vmax.f32 %v630, 0.0
        %v635 = vmax.f32 %v631, 0.0
        %v636 = vmax.f32 %v632, 0.0
        %v637 = vand.u32 2147483647, %v629
        %v638 = vand.u32 2147483647, %v630
        %v639 = vand.u32 2147483647, %v631
        %v640 = vand.u32 2147483647, %v632
        %v641 = vsub.f32 0.0, %v637
        %v642 = vsub.f32 0.0, %v638
        %v643 = vsub.f32 0.0, %v639
        %v644 = vsub.f32 0.0, %v640
        %v645 = vmul.f32 %v641, 1.442695
        %v646 = vpow.pop %v645
        %v647 = vmul.f32 %v642, 1.442695
        %v648 = vpow.pop %v647
        %v649 = vmul.f32 %v643, 1.442695
        %v650 = vpow.pop %v649
        %v651 = vmul.f32 %v644, 1.442695
        %v652 = vpow.pop %v651
        %v653 = vadd.f32 %v646, 1.0
        %v654 = vadd.f32 %v648, 1.0
        %v655 = vadd.f32 %v650, 1.0
        %v656 = vadd.f32 %v652, 1.0
        %v657 = vlog2.pop %v653
        %v658 = vmul.f32 %v657, 0.6931472
        %v659 = vlog2.pop %v654
        %v660 = vmul.f32 %v659, 0.6931472
        %v661 = vlog2.pop %v655
        %v662 = vmul.f32 %v661, 0.6931472
        %v663 = vlog2.pop %v656
        %v664 = vmul.f32 %v663, 0.6931472
        %v665 = vadd.f32 %v633, %v658
        %v666 = vadd.f32 %v634, %v660
        %v667 = vadd.f32 %v635, %v662
        %v668 = vadd.f32 %v636, %v664
        %v675 = vrot.slane %v570, 1
        %v676 = vrot.slane %v572, 1
        %v677 = vsel %vm578, %v675, %v676
        %v678 = vrot.slane %v571, 1
        %v679 = vrot.slane %v573, 1
        %v680 = vsel %vm578, %v678, %v679
        %v681 = vrot.slane %v574, 1
        %v682 = vsel %vm578, %v676, %v681
        %v683 = vrot.slane %v575, 1
        %v684 = vsel %vm578, %v679, %v683
        %v689 = vmul.f32 %v665, %v677
        %v690 = vmul.f32 %v666, %v680
        %v691 = vmul.f32 %v667, %v682
        %v692 = vmul.f32 %v668, %v684
        %v693 = vsub.f32 0.0, %v689
        %v694 = vsub.f32 0.0, %v690
        %v695 = vsub.f32 0.0, %v691
        %v696 = vsub.f32 0.0, %v692
        %v697 = vmax.f32 %v693, -23.02585
        %v698 = vmax.f32 %v694, -23.02585
        %v699 = vmax.f32 %v695, -23.02585
        %v700 = vmax.f32 %v696, -23.02585
        %vm701 = vcmask 130048
        %v703 = vsel %vm701, %v538, 0
        %v706 = vsel %vm701, %v539, 0
        %v709 = vsel %vm701, %v540, 0
        %711 = vmatprep.subr.mxu0 %v698
        %712 = vmatpush1.msra.mxu0 %v697
        %713 = vmatprep.subr.mxu0 %v700
        %714 = vmatpush1.msra.mxu0 %v699
        %715 = vmatprep.subr.mxu0 0.0
        %716 = vmatpush1.msra.mxu0 0.0
        %717 = vmatprep.subr.mxu0 0.0
        %718 = vmatpush1.msra.mxu0 0.0
        %719 = vmatprep.subr.mxu0 0.0
        %720 = vmatpush1.msra.mxu0 0.0
        %721 = vmatprep.subr.mxu0 0.0
        %722 = vmatpush1.msra.mxu0 0.0
        %723 = vmatprep.subr.mxu0 0.0
        %724 = vmatpush1.msra.mxu0 0.0
        %725 = vmatprep.subr.mxu0 0.0
        %726 = vmatpush1.msra.mxu0 0.0
        %727 = vmatprep.subr.mxu0 0.0
        %728 = vmatpush1.msra.mxu0 0.0
        %729 = vmatprep.subr.mxu0 0.0
        %730 = vmatpush1.msra.mxu0 0.0
        %731 = vmatprep.subr.mxu0 0.0
        %732 = vmatpush1.msra.mxu0 0.0
        %733 = vmatprep.subr.mxu0 0.0
        %734 = vmatpush1.msra.mxu0 0.0
        %735 = vmatprep.subr.mxu0 0.0
        %736 = vmatpush1.msra.mxu0 0.0
        %737 = vmatprep.subr.mxu0 0.0
        %738 = vmatpush1.msra.mxu0 0.0
        %739 = vmatprep.subr.mxu0 0.0
        %740 = vmatpush1.msra.mxu0 0.0
        %741 = vmatprep.subr.mxu0 0.0
        %742 = vmatpush1.msra.mxu0 0.0
        %743 = vmatprep.subr.mxu0 0.0
        %744 = vmatpush1.msra.mxu0 0.0
        %745 = vmatprep.subr.mxu0 0.0
        %746 = vmatpush1.msra.mxu0 0.0
        %747 = vmatprep.subr.mxu0 0.0
        %748 = vmatpush1.msra.mxu0 0.0
        %749 = vmatprep.subr.mxu0 0.0
        %750 = vmatpush1.msra.mxu0 0.0
        %751 = vmatprep.subr.mxu0 0.0
        %752 = vmatpush1.msra.mxu0 0.0
        %753 = vmatprep.subr.mxu0 0.0
        %754 = vmatpush1.msra.mxu0 0.0
        %755 = vmatprep.subr.mxu0 0.0
        %756 = vmatpush1.msra.mxu0 0.0
        %757 = vmatprep.subr.mxu0 0.0
        %758 = vmatpush1.msra.mxu0 0.0
        %759 = vmatprep.subr.mxu0 0.0
        %760 = vmatpush1.msra.mxu0 0.0
        %761 = vmatprep.subr.mxu0 0.0
        %762 = vmatpush1.msra.mxu0 0.0
        %763 = vmatprep.subr.mxu0 0.0
        %764 = vmatpush1.msra.mxu0 0.0
        %765 = vmatprep.subr.mxu0 0.0
        %766 = vmatpush1.msra.mxu0 0.0
        %767 = vmatprep.subr.mxu0 0.0
        %768 = vmatpush1.msra.mxu0 0.0
        %769 = vmatprep.subr.mxu0 0.0
        %770 = vmatpush1.msra.mxu0 0.0
        %771 = vmatprep.subr.mxu0 0.0
        %772 = vmatpush1.msra.mxu0 0.0
        %773 = vmatprep.subr.mxu0 0.0
        %774 = vmatpush1.msra.mxu0 0.0
        %775 = vmatprep.mubr.f32.mxu0 0.0
        %776 = vmatmul.mubr.f32.gmra.mrb[0].mxu0 %v703
        %v777 = vpop.f32.mrb[0].mxu0
        %v778 = vadd.f32 0.0, %v777
        %v779 = vpop.f32.mrb[0].mxu0
        %v780 = vadd.f32 0.0, %v779
        %781 = vmatprep.mubr.f32.mxu0 0.0
        %782 = vmatmul.mubr.f32.gmra.mrb[0].mxu0 %v706
        %v783 = vpop.f32.mrb[0].mxu0
        %v784 = vadd.f32 0.0, %v783
        %v785 = vpop.f32.mrb[0].mxu0
        %v786 = vadd.f32 0.0, %v785
        %787 = vmatprep.mubr.f32.mxu0 0.0
        %788 = vmatmul.mubr.f32.gmra.mrb[0].mxu0 %v709
        %v789 = vpop.f32.mrb[0].mxu0
        %v790 = vadd.f32 0.0, %v789
        %v791 = vpop.f32.mrb[0].mxu0
        %v792 = vadd.f32 0.0, %v791
        %793 = vdwg.mxu0
        %v794 = vmul.f32 %v778, 1.442695
        %v795 = vpow.pop %v794
        %v796 = vmul.f32 %v780, 1.442695
        %v797 = vpow.pop %v796
        %v798 = vmul.f32 %v784, 1.442695
        %v799 = vpow.pop %v798
        %v800 = vmul.f32 %v786, 1.442695
        %v801 = vpow.pop %v800
        %v802 = vmul.f32 %v790, 1.442695
        %v803 = vpow.pop %v802
        %v804 = vmul.f32 %v792, 1.442695
        %v805 = vpow.pop %v804
        %v812 = vrot.slane %v795, 1
        %v813 = vrot.slane %v799, 1
        %v814 = vsel %vm578, %v812, %v813
        %v815 = vrot.slane %v797, 1
        %v816 = vrot.slane %v801, 1
        %v817 = vsel %vm578, %v815, %v816
        %v818 = vrot.slane %v803, 1
        %v819 = vsel %vm578, %v813, %v818
        %v820 = vrot.slane %v805, 1
        %v821 = vsel %vm578, %v816, %v820
        %v826 = vsub.f32 %v795, %v814
        %v827 = vsub.f32 %v797, %v817
        %v828 = vsub.f32 %v799, %v819
        %v829 = vsub.f32 %v801, %v821
        %830 = vst [vmem:[%s529] sm:$0xff] %v826
        %831 = vst [vmem:[%s529 + $0x8] sm:$0xff] %v827
        %832 = vst [vmem:[%s529 + $0x10] sm:$0xff] %v828
        %833 = vst [vmem:[%s529 + $0x18] sm:$0xff] %v829
        %v834 = vadd.f32 %v826, %v828
        %v835 = vrot.slane %v834, 4
        %v836 = vadd.f32 %v834, %v835
        %v837 = vrot.slane %v836, 2
        %v838 = vadd.f32 %v836, %v837
        %v839 = vrot.slane %v838, 1
        %v840 = vadd.f32 %v838, %v839
        %v841 = vadd.f32 %v827, %v829
        %v842 = vrot.slane %v841, 4
        %v843 = vadd.f32 %v841, %v842
        %v844 = vrot.slane %v843, 2
        %v845 = vadd.f32 %v843, %v844
        %v846 = vrot.slane %v845, 1
        %v847 = vadd.f32 %v845, %v846
        %v848 = vsub.f32 1.0, %v840
        %v849 = vsub.f32 1.0, %v847
        %v850 = vld [vmem:[%s462] sm:$0xff]
        %v851 = vld [vmem:[%s462 + $0x8] sm:$0xff]
        %v852 = vld [vmem:[%s462 + $0x10] sm:$0xff]
        %v853 = vld [vmem:[%s462 + $0x18] sm:$0xff]
        %v854 = vld [vmem:[%s462 + $0x20] sm:$0x1]
        %v855 = vld [vmem:[%s462 + $0x28] sm:$0x1]
        %v862 = vrot.slane %v850, 1
        %v863 = vrot.slane %v852, 1
        %v864 = vsel %vm578, %v862, %v863
        %v865 = vrot.slane %v851, 1
        %v866 = vrot.slane %v853, 1
        %v867 = vsel %vm578, %v865, %v866
        %v868 = vrot.slane %v854, 1
        %v869 = vsel %vm578, %v863, %v868
        %v870 = vrot.slane %v855, 1
        %v871 = vsel %vm578, %v866, %v870
        %v876 = vadd.f32 %v850, %v864
        %v877 = vadd.f32 %v851, %v867
        %v878 = vadd.f32 %v852, %v869
        %v879 = vadd.f32 %v853, %v871
        %v880 = vmul.f32 %v876, 0.5
        %v881 = vmul.f32 %v877, 0.5
        %v882 = vmul.f32 %v878, 0.5
        %v883 = vmul.f32 %v879, 0.5
        %v884 = vmul.f32 %v826, %v880
        %v885 = vmul.f32 %v827, %v881
        %v886 = vmul.f32 %v828, %v882
        %v887 = vmul.f32 %v829, %v883
        %v888 = vadd.f32 %v884, %v886
        %v889 = vrot.slane %v888, 4
        %v890 = vadd.f32 %v888, %v889
        %v891 = vrot.slane %v890, 2
        %v892 = vadd.f32 %v890, %v891
        %v893 = vrot.slane %v892, 1
        %v894 = vadd.f32 %v892, %v893
        %v895 = vadd.f32 %v885, %v887
        %v896 = vrot.slane %v895, 4
        %v897 = vadd.f32 %v895, %v896
        %v898 = vrot.slane %v897, 2
        %v899 = vadd.f32 %v897, %v898
        %v900 = vrot.slane %v899, 1
        %v901 = vadd.f32 %v899, %v900
        %v902 = vadd.f32 %v894, %v848
        %v903 = vadd.f32 %v901, %v849
        %v904 = vmul.f32 %v902, 2.0
        %v905 = vmul.f32 %v903, 2.0
        %v906 = vsub.f32 %v904, 1.0
        %v907 = vsub.f32 %v905, 1.0
        %s908 = scalar_lea.vmem %s462, 48 [#allocation5]
        %v909 = vld [vmem:[%s908] sm:$0xff]
        %v910 = vld [vmem:[%s908 + $0x8] sm:$0xff]
        %v911 = vld [vmem:[%s908 + $0x10] sm:$0xff]
        %v912 = vld [vmem:[%s908 + $0x18] sm:$0xff]
        %v913 = vld [vmem:[%s908 + $0x20] sm:$0x1]
        %v914 = vld [vmem:[%s908 + $0x28] sm:$0x1]
        %v921 = vrot.slane %v909, 1
        %v922 = vrot.slane %v911, 1
        %v923 = vsel %vm578, %v921, %v922
        %v924 = vrot.slane %v910, 1
        %v925 = vrot.slane %v912, 1
        %v926 = vsel %vm578, %v924, %v925
        %v927 = vrot.slane %v913, 1
        %v928 = vsel %vm578, %v922, %v927
        %v929 = vrot.slane %v914, 1
        %v930 = vsel %vm578, %v925, %v929
        %v935 = vadd.f32 %v909, %v923
        %v936 = vadd.f32 %v910, %v926
        %v937 = vadd.f32 %v911, %v928
        %v938 = vadd.f32 %v912, %v930
        %v939 = vmul.f32 %v935, 0.5
        %v940 = vmul.f32 %v936, 0.5
        %v941 = vmul.f32 %v937, 0.5
        %v942 = vmul.f32 %v938, 0.5
        %v943 = vmul.f32 %v826, %v939
        %v944 = vmul.f32 %v827, %v940
        %v945 = vmul.f32 %v828, %v941
        %v946 = vmul.f32 %v829, %v942
        %v947 = vadd.f32 %v943, %v945
        %v948 = vrot.slane %v947, 4
        %v949 = vadd.f32 %v947, %v948
        %v950 = vrot.slane %v949, 2
        %v951 = vadd.f32 %v949, %v950
        %v952 = vrot.slane %v951, 1
        %v953 = vadd.f32 %v951, %v952
        %v954 = vadd.f32 %v944, %v946
        %v955 = vrot.slane %v954, 4
        %v956 = vadd.f32 %v954, %v955
        %v957 = vrot.slane %v956, 2
        %v958 = vadd.f32 %v956, %v957
        %v959 = vrot.slane %v958, 1
        %v960 = vadd.f32 %v958, %v959
        %v961 = vadd.f32 %v953, %v848
        %v962 = vadd.f32 %v960, %v849
        %v963 = vmul.f32 %v961, 2.0
        %v964 = vmul.f32 %v962, 2.0
        %v965 = vsub.f32 %v963, 1.0
        %v966 = vsub.f32 %v964, 1.0
        %s967 = scalar_lea.vmem %s462, 96 [#allocation5]
        %v968 = vld [vmem:[%s967] sm:$0xff]
        %v969 = vld [vmem:[%s967 + $0x8] sm:$0xff]
        %v970 = vld [vmem:[%s967 + $0x10] sm:$0xff]
        %v971 = vld [vmem:[%s967 + $0x18] sm:$0xff]
        %v972 = vld [vmem:[%s967 + $0x20] sm:$0x1]
        %v973 = vld [vmem:[%s967 + $0x28] sm:$0x1]
        %v980 = vrot.slane %v968, 1
        %v981 = vrot.slane %v970, 1
        %v982 = vsel %vm578, %v980, %v981
        %v983 = vrot.slane %v969, 1
        %v984 = vrot.slane %v971, 1
        %v985 = vsel %vm578, %v983, %v984
        %v986 = vrot.slane %v972, 1
        %v987 = vsel %vm578, %v981, %v986
        %v988 = vrot.slane %v973, 1
        %v989 = vsel %vm578, %v984, %v988
        %v994 = vadd.f32 %v968, %v982
        %v995 = vadd.f32 %v969, %v985
        %v996 = vadd.f32 %v970, %v987
        %v997 = vadd.f32 %v971, %v989
        %v998 = vmul.f32 %v994, 0.5
        %v999 = vmul.f32 %v995, 0.5
        %v1000 = vmul.f32 %v996, 0.5
        %v1001 = vmul.f32 %v997, 0.5
        %v1002 = vmul.f32 %v826, %v998
        %v1003 = vmul.f32 %v827, %v999
        %v1004 = vmul.f32 %v828, %v1000
        %v1005 = vmul.f32 %v829, %v1001
        %v1006 = vadd.f32 %v1002, %v1004
        %v1007 = vrot.slane %v1006, 4
        %v1008 = vadd.f32 %v1006, %v1007
        %v1009 = vrot.slane %v1008, 2
        %v1010 = vadd.f32 %v1008, %v1009
        %v1011 = vrot.slane %v1010, 1
        %v1012 = vadd.f32 %v1010, %v1011
        %v1013 = vadd.f32 %v1003, %v1005
        %v1014 = vrot.slane %v1013, 4
        %v1015 = vadd.f32 %v1013, %v1014
        %v1016 = vrot.slane %v1015, 2
        %v1017 = vadd.f32 %v1015, %v1016
        %v1018 = vrot.slane %v1017, 1
        %v1019 = vadd.f32 %v1017, %v1018
        %v1020 = vadd.f32 %v1012, %v848
        %v1021 = vadd.f32 %v1019, %v849
        %v1022 = vmul.f32 %v1020, 2.0
        %v1023 = vmul.f32 %v1021, 2.0
        %v1024 = vsub.f32 %v1022, 1.0
        %v1025 = vsub.f32 %v1023, 1.0
        %v1026 = vmul.f32 %v826, %v597
        %v1027 = vmul.f32 %v827, %v598
        %v1028 = vmul.f32 %v828, %v599
        %v1029 = vmul.f32 %v829, %v600
        %v1030 = vadd.f32 %v1026, %v1028
        %v1031 = vrot.slane %v1030, 4
        %v1032 = vadd.f32 %v1030, %v1031
        %v1033 = vrot.slane %v1032, 2
        %v1034 = vadd.f32 %v1032, %v1033
        %v1035 = vrot.slane %v1034, 1
        %v1036 = vadd.f32 %v1034, %v1035
        %v1037 = vadd.f32 %v1027, %v1029
        %v1038 = vrot.slane %v1037, 4
        %v1039 = vadd.f32 %v1037, %v1038
        %v1040 = vrot.slane %v1039, 2
        %v1041 = vadd.f32 %v1039, %v1040
        %v1042 = vrot.slane %v1041, 1
        %v1043 = vadd.f32 %v1041, %v1042
        %v1044 = vrcp.pop %v840
        %v1045 = vmul.f32 %v1036, %v1044
        %v1046 = vrcp.pop %v847
        %v1047 = vmul.f32 %v1043, %v1046
        %vm1048 = vcmp.ne.f32.partialorder %v1045, %v1045
        %vm1049 = vcmp.ne.f32.partialorder %v1047, %v1047
        %v1050 = vsel %vm1048, inf, %v1045
        %v1051 = vsel %vm1049, inf, %v1047
        %v1052 = vstv %s536
        %v1053 = vmax.f32 %v1052, %v1050
        %v1054 = vmax.f32 %v1052, %v1051
        %v1055 = vstv %s537
        %v1056 = vmin.f32 %v1055, %v1053
        %v1057 = vmin.f32 %v1055, %v1054
        %v1058 = vld [vmem:[%s483] sm:$0xff]
        %v1059 = vld [vmem:[%s483 + $0x8] sm:$0xff]
        %v1060 = vld [vmem:[%s483 + $0x10] sm:$0xff]
        %v1061 = vld [vmem:[%s483 + $0x18] sm:$0xff]
        %v1062 = vld [vmem:[%s483 + $0x20] sm:$0x1]
        %v1063 = vld [vmem:[%s483 + $0x28] sm:$0x1]
        %v1070 = vrot.slane %v1058, 1
        %v1071 = vrot.slane %v1060, 1
        %v1072 = vsel %vm578, %v1070, %v1071
        %v1073 = vrot.slane %v1059, 1
        %v1074 = vrot.slane %v1061, 1
        %v1075 = vsel %vm578, %v1073, %v1074
        %v1076 = vrot.slane %v1062, 1
        %v1077 = vsel %vm578, %v1071, %v1076
        %v1078 = vrot.slane %v1063, 1
        %v1079 = vsel %vm578, %v1074, %v1078
        %v1084 = vadd.f32 %v1058, %v1072
        %v1085 = vadd.f32 %v1059, %v1075
        %v1086 = vadd.f32 %v1060, %v1077
        %v1087 = vadd.f32 %v1061, %v1079
        %v1088 = vmul.f32 %v1084, 0.5
        %v1089 = vmul.f32 %v1085, 0.5
        %v1090 = vmul.f32 %v1086, 0.5
        %v1091 = vmul.f32 %v1087, 0.5
        %v1092 = vmul.f32 %v826, %v1088
        %v1093 = vmul.f32 %v827, %v1089
        %v1094 = vmul.f32 %v828, %v1090
        %v1095 = vmul.f32 %v829, %v1091
        %v1096 = vadd.f32 %v1092, %v1094
        %v1097 = vrot.slane %v1096, 4
        %v1098 = vadd.f32 %v1096, %v1097
        %v1099 = vrot.slane %v1098, 2
        %v1100 = vadd.f32 %v1098, %v1099
        %v1101 = vrot.slane %v1100, 1
        %v1102 = vadd.f32 %v1100, %v1101
        %v1103 = vadd.f32 %v1093, %v1095
        %v1104 = vrot.slane %v1103, 4
        %v1105 = vadd.f32 %v1103, %v1104
        %v1106 = vrot.slane %v1105, 2
        %v1107 = vadd.f32 %v1105, %v1106
        %v1108 = vrot.slane %v1107, 1
        %v1109 = vadd.f32 %v1107, %v1108
        %v1110 = vadd.f32 %v1102, %v848
        %v1111 = vadd.f32 %v1109, %v849
        %s1112 = scalar_lea.vmem %s483, 48 [#allocation8]
        %v1113 = vld [vmem:[%s1112] sm:$0xff]
        %v1114 = vld [vmem:[%s1112 + $0x8] sm:$0xff]
        %v1115 = vld [vmem:[%s1112 + $0x10] sm:$0xff]
        %v1116 = vld [vmem:[%s1112 + $0x18] sm:$0xff]
        %v1117 = vld [vmem:[%s1112 + $0x20] sm:$0x1]
        %v1118 = vld [vmem:[%s1112 + $0x28] sm:$0x1]
        %v1125 = vrot.slane %v1113, 1
        %v1126 = vrot.slane %v1115, 1
        %v1127 = vsel %vm578, %v1125, %v1126
        %v1128 = vrot.slane %v1114, 1
        %v1129 = vrot.slane %v1116, 1
        %v1130 = vsel %vm578, %v1128, %v1129
        %v1131 = vrot.slane %v1117, 1
        %v1132 = vsel %vm578, %v1126, %v1131
        %v1133 = vrot.slane %v1118, 1
        %v1134 = vsel %vm578, %v1129, %v1133
        %v1139 = vadd.f32 %v1113, %v1127
        %v1140 = vadd.f32 %v1114, %v1130
        %v1141 = vadd.f32 %v1115, %v1132
        %v1142 = vadd.f32 %v1116, %v1134
        %v1143 = vmul.f32 %v1139, 0.5
        %v1144 = vmul.f32 %v1140, 0.5
        %v1145 = vmul.f32 %v1141, 0.5
        %v1146 = vmul.f32 %v1142, 0.5
        %v1147 = vmul.f32 %v826, %v1143
        %v1148 = vmul.f32 %v827, %v1144
        %v1149 = vmul.f32 %v828, %v1145
        %v1150 = vmul.f32 %v829, %v1146
        %v1151 = vadd.f32 %v1147, %v1149
        %v1152 = vrot.slane %v1151, 4
        %v1153 = vadd.f32 %v1151, %v1152
        %v1154 = vrot.slane %v1153, 2
        %v1155 = vadd.f32 %v1153, %v1154
        %v1156 = vrot.slane %v1155, 1
        %v1157 = vadd.f32 %v1155, %v1156
        %v1158 = vadd.f32 %v1148, %v1150
        %v1159 = vrot.slane %v1158, 4
        %v1160 = vadd.f32 %v1158, %v1159
        %v1161 = vrot.slane %v1160, 2
        %v1162 = vadd.f32 %v1160, %v1161
        %v1163 = vrot.slane %v1162, 1
        %v1164 = vadd.f32 %v1162, %v1163
        %v1165 = vadd.f32 %v1157, %v848
        %v1166 = vadd.f32 %v1164, %v849
        %s1167 = scalar_lea.vmem %s483, 96 [#allocation8]
        %v1168 = vld [vmem:[%s1167] sm:$0xff]
        %v1169 = vld [vmem:[%s1167 + $0x8] sm:$0xff]
        %v1170 = vld [vmem:[%s1167 + $0x10] sm:$0xff]
        %v1171 = vld [vmem:[%s1167 + $0x18] sm:$0xff]
        %v1172 = vld [vmem:[%s1167 + $0x20] sm:$0x1]
        %v1173 = vld [vmem:[%s1167 + $0x28] sm:$0x1]
        %v1180 = vrot.slane %v1168, 1
        %v1181 = vrot.slane %v1170, 1
        %v1182 = vsel %vm578, %v1180, %v1181
        %v1183 = vrot.slane %v1169, 1
        %v1184 = vrot.slane %v1171, 1
        %v1185 = vsel %vm578, %v1183, %v1184
        %v1186 = vrot.slane %v1172, 1
        %v1187 = vsel %vm578, %v1181, %v1186
        %v1188 = vrot.slane %v1173, 1
        %v1189 = vsel %vm578, %v1184, %v1188
        %v1194 = vadd.f32 %v1168, %v1182
        %v1195 = vadd.f32 %v1169, %v1185
        %v1196 = vadd.f32 %v1170, %v1187
        %v1197 = vadd.f32 %v1171, %v1189
        %v1198 = vmul.f32 %v1194, 0.5
        %v1199 = vmul.f32 %v1195, 0.5
        %v1200 = vmul.f32 %v1196, 0.5
        %v1201 = vmul.f32 %v1197, 0.5
        %v1202 = vmul.f32 %v826, %v1198
        %v1203 = vmul.f32 %v827, %v1199
        %v1204 = vmul.f32 %v828, %v1200
        %v1205 = vmul.f32 %v829, %v1201
        %v1206 = vadd.f32 %v1202, %v1204
        %v1207 = vrot.slane %v1206, 4
        %v1208 = vadd.f32 %v1206, %v1207
        %v1209 = vrot.slane %v1208, 2
        %v1210 = vadd.f32 %v1208, %v1209
        %v1211 = vrot.slane %v1210, 1
        %v1212 = vadd.f32 %v1210, %v1211
        %v1213 = vadd.f32 %v1203, %v1205
        %v1214 = vrot.slane %v1213, 4
        %v1215 = vadd.f32 %v1213, %v1214
        %v1216 = vrot.slane %v1215, 2
        %v1217 = vadd.f32 %v1215, %v1216
        %v1218 = vrot.slane %v1217, 1
        %v1219 = vadd.f32 %v1217, %v1218
        %v1220 = vadd.f32 %v1212, %v848
        %v1221 = vadd.f32 %v1219, %v849
        %v1222 = vsel %vm557, %v906, %v965
        %v1223 = vsel %vm557, %v907, %v966
        %vm1224 = vcmask 1041408
        %v1225 = vsel %vm1224, %v1222, %v1024
        %v1226 = vsel %vm1224, %v1223, %v1025
        %vm1227 = vcmask 1042432
        %v1228 = vsel %vm1227, %v1225, %v1056
        %v1229 = vsel %vm1227, %v1226, %v1057
        %vm1230 = vcmask 1043456
        %v1231 = vsel %vm1230, %v1228, %v1110
        %v1232 = vsel %vm1230, %v1229, %v1111
        %vm1233 = vcmask 1044480
        %v1234 = vsel %vm1233, %v1231, %v1165
        %v1235 = vsel %vm1233, %v1232, %v1166
        %vm1236 = vcmask 1045504
        %v1237 = vsel %vm1236, %v1234, %v1220
        %v1238 = vsel %vm1236, %v1235, %v1221
        %1239 = vst [vmem:[%s522] sm:$0x7f] %v1237
        %1240 = vst [vmem:[%s522 + $0x8] sm:$0x7f] %v1238
        %s1241 = sand.u32 %s180, 1
        %s1242 = scalar_lea.sflag [#allocation3], %s1241
        %s1243 = sand.u32 %s180, 1
        %s1244 = smul.addr %s1243, 16
        %s1245 = scalar_lea.vmem [#allocation9], %s1244
        %s1246 = sand.u32 %s206, 1
        %s1247 = scalar_lea.sflag [#allocation11], %s1246
        %s1248 = sand.u32 %s206, 1
        %s1249 = smul.addr %s1248, 32
        %s1250 = scalar_lea.vmem [#allocation10], %s1249
        // Predicated region
        $region141: #{tpu_custom_call.1} parent=119 // pred_check
          %p1251 = pneg %p190
        $region142: #{tpu_custom_call.1} parent=119 // pred_check_branch
          %1253 = sbr.rel (%p1251) target = $region144
        $region143: #{tpu_custom_call.1} parent=119 // pred_region
          %s1254 = smul.u32 2, %s26
          %s1256 = ssub.s32 256, 256
          %1257 = vsyncadd %s1242, %s1256
          %s1258 = smul.addr %s1254, 128
          %s1259 = scalar_lea.hbm %s6, %s1258
          %s1261 = sshll.u32 %s1245, 4
          %s1262 = int_to_ptr.vmem [resolvable:$true] %s1261
          %1264 = dma.vmem_to_hbm [thread:$0]  %s1262, 256, %s1259, %s1242
        $region144: #{tpu_custom_call.1} parent=119 // pred_fallthru
          _
        // Predicated region
        $region145: #{tpu_custom_call.1} parent=119 // pred_check
          %p1265 = pneg %p216
        $region146: #{tpu_custom_call.1} parent=119 // pred_check_branch
          %1267 = sbr.rel (%p1265) target = $region148
        $region147: #{tpu_custom_call.1} parent=119 // pred_region
          %s1268 = smul.u32 2, %s26
          %s1270 = ssub.s32 512, 512
          %1271 = vsyncadd %s1247, %s1270
          %s1272 = smul.addr %s1268, 128
          %s1273 = scalar_lea.hbm %s7, %s1272
          %s1274 = sshll.u32 %s1250, 4
          %s1275 = int_to_ptr.vmem [resolvable:$true] %s1274
          %1280 = dma.vmem_to_hbm [thread:$0]  %s1275, 512, %s1273, %s1247, 256, 2048, 16
        $region148: #{tpu_custom_call.1} parent=119 // pred_fallthru
          _
      $region120: #{tpu_custom_call.1} parent=5 // pred_fallthru
        _
      %p1281 = scmp.le.s32.totalorder 2, %s21
      // Predicated region
      $region149: #{tpu_custom_call.1} parent=5 // pred_check
        %p1282 = pneg %p1281
      $region150: #{tpu_custom_call.1} parent=5 // pred_check_branch
        %1284 = sbr.rel (%p1282) target = $region152
      $region151: #{tpu_custom_call.1} parent=5 // pred_region
        %s1285 = ssub.s32 %s21, 2
        // Predicated region
        $region153: #{tpu_custom_call.1} parent=151 // pred_check
          %p1286 = pneg %p196
        $region154: #{tpu_custom_call.1} parent=151 // pred_check_branch
          %1288 = sbr.rel (%p1286) target = $region156
        $region155: #{tpu_custom_call.1} parent=151 // pred_region
          %s1289 = sand.u32 %s181, 1
          %s1290 = scalar_lea.sflag [#allocation3], %s1289
          %s1291 = sand.u32 %s181, 1
          %s1292 = smul.addr %s1291, 16
          %s1293 = scalar_lea.vmem [#allocation9], %s1292
          %1294 = dma.done %s1290, 256
        $region156: #{tpu_custom_call.1} parent=151 // pred_fallthru
          _
        // Predicated region
        $region157: #{tpu_custom_call.1} parent=151 // pred_check
          %p1295 = pneg %p222
        $region158: #{tpu_custom_call.1} parent=151 // pred_check_branch
          %1297 = sbr.rel (%p1295) target = $region160
        $region159: #{tpu_custom_call.1} parent=151 // pred_region
          %s1298 = sand.u32 %s207, 1
          %s1299 = scalar_lea.sflag [#allocation11], %s1298
          %s1300 = sand.u32 %s207, 1
          %s1301 = smul.addr %s1300, 32
          %s1302 = scalar_lea.vmem [#allocation10], %s1301
          %1303 = dma.done %s1299, 512
        $region160: #{tpu_custom_call.1} parent=151 // pred_fallthru
          _
      $region152: #{tpu_custom_call.1} parent=5 // pred_fallthru
        _
    $region6: #{tpu_custom_call.1} parent=1 // loop_footer
      %s25 = sadd.s32 1, %s21
    $region7: #{tpu_custom_call.1} parent=1 // loop_footer_branch
      %20 = sbr.rel target = $region3
    $region8: #{tpu_custom_call.1} parent=1 // loop_exit
      _
    %1304 = vsyncpa [#allocation3], 1
    %s1305 = scalar_lea.sflag [#allocation3], 1
    %1306 = vsyncpa %s1305, 1
    %1307 = vsyncpa [#allocation11], 1
    %s1308 = scalar_lea.sflag [#allocation11], 1
    %1309 = vsyncpa %s1308, 1
    %1310 = vsyncpa [#allocation4], 1
    %s1311 = scalar_lea.sflag [#allocation4], 1
    %1312 = vsyncpa %s1311, 1

</llo_original>
